<compile_context>
chip_gen: v7x
topology: tpu7x:2x2x1
jax: 0.10.0
libtpu: 0.0.40
codegen_flags: <defaults>
</compile_context>

<pallas_src>
import functools

import jax
import jax.numpy as jnp
from jax import lax
from jax.experimental import pallas as pl
from jax.experimental.pallas import tpu as pltpu


def adapter_kernel(x_ref, w1_ref, w2_ref, wc_ref, wt_ref, nw_ref, nb_ref,
                   out_ref, *, H2, W2, eps=1e-5):
    f32 = jnp.float32
    M = H2 * W2
    C = wc_ref.shape[-1]
    wdt = wc_ref.dtype            # MXU compute dtype == weight dtype (pass bf16 for peak)

    # ---- load one batch element: (H2, 2, W2, 2C).  Row parity on axis 1; column parity
    #      packed into the lane axis (lanes [0:C) = even cols, [C:2C) = odd cols). ----
    X = x_ref[...]
    xe = X[:, 0].reshape(M, 2 * C)          # even rows  (W2 % 8 == 0 -> no-op relayout)
    xo = X[:, 1].reshape(M, 2 * C)          # odd rows
    xe_f = xe.astype(f32)                   # f32 path: pooling / residual / LayerNorm
    xo_f = xo.astype(f32)
    xe_w = xe.astype(wdt)                   # matmul path (cast once)
    xo_w = xo.astype(wdt)

    # spatial phases of the input, each (M, C) indexed by m = p*W2 + q:
    # (even row, even col) enters via xe_w's low lanes; the rest are sliced as needed.
    p1 = xe_w[:, C:]                        # (even row, odd col)
    p2 = xo_w[:, :C]                        # (odd row, even col)
    p3 = xo_w[:, C:]                        # (odd row, odd col)

    # ---- boundary masks from (M,1) iotas (broadcast inside jnp.where) ----
    p_idx = lax.broadcasted_iota(jnp.int32, (H2, W2, 1), 0).reshape(M, 1)
    q_idx = lax.broadcasted_iota(jnp.int32, (H2, W2, 1), 1).reshape(M, 1)
    row_prev_ok = p_idx >= 1               # reading row p-1 is in-bounds
    row_next_ok = p_idx <= H2 - 2          # reading row p+1 is in-bounds
    col_prev_ok = q_idx >= 1               # reading col q-1 is in-bounds
    col_next_ok = q_idx <= W2 - 2          # reading col q+1 is in-bounds

    def tap(a, dp, dq):
        """b[p*W2+q, :] = a[(p+dp)*W2 + (q+dq), :], zero where (p+dp, q+dq) is OOB."""
        s = dp * W2 + dq
        b = pltpu.roll(a, (-s) % M, axis=0) if s != 0 else a
        mask = None
        if dp < 0:
            mask = row_prev_ok
        elif dp > 0:
            mask = row_next_ok
        if dq < 0:
            mask = col_prev_ok if mask is None else jnp.logical_and(mask, col_prev_ok)
        elif dq > 0:
            mask = col_next_ok if mask is None else jnp.logical_and(mask, col_next_ok)
        if mask is not None:
            b = jnp.where(mask, b, jnp.zeros((), b.dtype))
        return b

    # ---- Conv2d(C, C, k=3, s=2, p=1, bias=False) as im2col in phase space: (M, 9C) LHS
    #      (tap-major, matching wc_ref's K-stacking), built from the UNGATED input so the
    #      shift/concat work overlaps with the SE-gate dependency chain. ----
    conv_lhs = jnp.concatenate([
        tap(p3, -1, -1),          # (kh,kw)=(0,0): x[2p-1, 2q-1]
        tap(p2, -1, 0),           # (0,1): x[2p-1, 2q  ]
        tap(p3, -1, 0),           # (0,2): x[2p-1, 2q+1]
        tap(p1, 0, -1),           # (1,0): x[2p  , 2q-1]
        xe_w,                     # (1,1) and (1,2): x[2p, 2q] | x[2p, 2q+1] (lane-adjacent)
        tap(p3, 0, -1),           # (2,0): x[2p+1, 2q-1]
        xo_w,                     # (2,1) and (2,2): x[2p+1, 2q] | x[2p+1, 2q+1]
    ], axis=-1)                   # (M, 9C)

    # ---- SE channel gate: global average pool -> fc1 -> ReLU -> fc2 -> sigmoid ----
    s2 = jnp.sum(xe_f + xo_f, axis=0, keepdims=True)              # (1, 2C)
    pooled = (s2[:, :C] + s2[:, C:]) * (1.0 / (4 * M))            # (1, C)
    h = jnp.maximum(jnp.dot(pooled.astype(wdt), w1_ref[...],
                            preferred_element_type=f32), 0.0)     # (1, Hd)
    z = jnp.dot(h.astype(wdt), w2_ref[...], preferred_element_type=f32)
    gate = (1.0 / (1.0 + jnp.exp(-z))).astype(wdt)                # (1, C)

    # per-channel gate commutes with the spatial taps -> scale the im2col LHS once.
    gate9 = jnp.concatenate([gate] * 9, axis=-1)                  # (1, 9C)
    d = jnp.dot(conv_lhs * gate9, wc_ref[...], preferred_element_type=f32)   # (M, C)
    d = jnp.maximum(d, 0.0).astype(wdt)                           # ReLU; cast once

    # shifted views of the downsampled map, shared by the transposed conv
    d_h, d_w, d_hw = tap(d, -1, 0), tap(d, 0, -1), tap(d, -1, -1)
    d_hn, d_wn = tap(d, 1, 0), tap(d, 0, 1)
    d_hwn, d_hnw, d_hnwn = tap(d, -1, 1), tap(d, 1, -1), tap(d, 1, 1)

    # ---- ConvTranspose2d(C, C, k=4, s=2, p=1, bias=False): one (M,4C)x(4C,C) matmul per
    #      output phase (wt_ref[i] is K-stacked to match each LHS concat order). ----
    def upsample(parts, i):
        return jnp.dot(jnp.concatenate(parts, axis=-1), wt_ref[i],
                       preferred_element_type=f32)

    u0 = upsample([d, d_h, d_w, d_hw], 0)          # out[2p  , 2q  ]
    u1 = upsample([d_wn, d, d_hwn, d_h], 1)        # out[2p  , 2q+1]
    u2 = upsample([d_hn, d, d_hnw, d_w], 2)        # out[2p+1, 2q  ]
    u3 = upsample([d_hnwn, d_hn, d_wn, d], 3)      # out[2p+1, 2q+1]

    # ---- ReLU -> residual (skip_connect=True) -> LayerNorm over channels (two-pass) ----
    nw = nw_ref[...].astype(f32)
    nb = nb_ref[...].astype(f32)
    inv_c = 1.0 / C

    def finalize(x_phase, u_phase):
        y = x_phase + jnp.maximum(u_phase, 0.0)
        mu = jnp.sum(y, axis=-1, keepdims=True) * inv_c
        yc = y - mu
        var = jnp.sum(yc * yc, axis=-1, keepdims=True) * inv_c
        return (yc * lax.rsqrt(var + eps)) * nw + nb

    y0 = finalize(xe_f[:, :C], u0)
    y1 = finalize(xe_f[:, C:], u1)
    y2 = finalize(xo_f[:, :C], u2)
    y3 = finalize(xo_f[:, C:], u3)

    # ---- repack (column parity -> lanes, row parity -> axis 1) and store ----
    ye = jnp.concatenate([y0, y1], axis=-1).astype(out_ref.dtype).reshape(H2, W2, 2 * C)
    yo = jnp.concatenate([y2, y3], axis=-1).astype(out_ref.dtype).reshape(H2, W2, 2 * C)
    out_ref[:, 0, :, :] = ye
    out_ref[:, 1, :, :] = yo


def adapter_layer(x, params):
    """x: [B, H, W, C] channels-last (as the PyTorch module receives it)."""
    B, H, W, C = x.shape
    assert H % 2 == 0 and W % 2 == 0, "AdapterLayer kernel assumes even H, W"
    H2, W2 = H // 2, W // 2
    M = H2 * W2
    assert W2 % 8 == 0, "kernel assumes W/2 is a multiple of 8 (sublane-aligned flatten)"
    # TODO(synk): generalize to W2 % 8 != 0 (padded flatten), and add an M-tile grid axis
    # with +-1-row halos + a hoisted (B,C) SE-gate pre-pass + single-buffered bf16 weights
    # for feature maps that exceed v7x's 64 MiB VMEM.

    w1, w2, wc, wt, nw, nb = params
    Hd = w1.shape[1]

    # The only host-side shape ops are free, contiguous reshapes (no transposes, no extra
    # HBM passes): row parity -> axis 2, column parity -> packed into the lane axis.
    x5 = x.reshape(B, H2, 2, W2, 2 * C)

    # Conv 3x3 taps K-stacked (tap-major, then c_in): (9C, C).
    wc_stack = wc.reshape(9 * C, C)
    # ConvT 4x4 taps K-stacked per output phase, matching the kernel's LHS concat order.
    wt_k = wt.reshape(16, C, C)
    wt_stack = jnp.stack([
        jnp.concatenate([wt_k[5], wt_k[13], wt_k[7], wt_k[15]], axis=0),   # out[2p  ,2q  ]
        jnp.concatenate([wt_k[4], wt_k[6], wt_k[12], wt_k[14]], axis=0),   # out[2p  ,2q+1]
        jnp.concatenate([wt_k[1], wt_k[9], wt_k[3], wt_k[11]], axis=0),    # out[2p+1,2q  ]
        jnp.concatenate([wt_k[0], wt_k[2], wt_k[8], wt_k[10]], axis=0),    # out[2p+1,2q+1]
    ], axis=0)                                                             # (4, 4C, C)

    kernel = functools.partial(adapter_kernel, H2=H2, W2=W2)

    x_bytes = jnp.dtype(x.dtype).itemsize
    w_bytes = jnp.dtype(w1.dtype).itemsize
    cost = pl.CostEstimate(
        flops=2 * B * M * 25 * C * C + 4 * B * C * Hd,
        transcendentals=B * C,
        bytes_accessed=2 * B * H * W * C * x_bytes
        + (25 * C * C + 2 * C * Hd + 2 * C) * w_bytes,
    )

    out5 = pl.pallas_call(
        kernel,
        out_shape=jax.ShapeDtypeStruct((B, H2, 2, W2, 2 * C), x.dtype),
        grid_spec=pltpu.PrefetchScalarGridSpec(
            num_scalar_prefetch=0,
            grid=(B,),
            in_specs=[
                pl.BlockSpec((None, H2, 2, W2, 2 * C), lambda b: (b, 0, 0, 0, 0)),
                pl.BlockSpec((C, Hd), lambda b: (0, 0)),            # SE fc1
                pl.BlockSpec((Hd, C), lambda b: (0, 0)),            # SE fc2
                pl.BlockSpec((9 * C, C), lambda b: (0, 0)),         # conv taps (K-stacked)
                pl.BlockSpec((4, 4 * C, C), lambda b: (0, 0, 0)),   # convT taps (K-stacked)
                pl.BlockSpec((1, C), lambda b: (0, 0)),             # LN weight
                pl.BlockSpec((1, C), lambda b: (0, 0)),             # LN bias
            ],
            out_specs=pl.BlockSpec((None, H2, 2, W2, 2 * C), lambda b: (b, 0, 0, 0, 0)),
        ),
        compiler_params=pltpu.CompilerParams(
            dimension_semantics=("parallel",),
            vmem_limit_bytes=48 * 1024 * 1024,
        ),
        cost_estimate=cost,
    )(x5, w1, w2, wc_stack, wt_stack, nw, nb)

    return out5.reshape(B, H, W, C)      # free, contiguous reshape


def adapter_layer_ref(x, params):
    """Pure-JAX reference mirroring the PyTorch forward (correctness check)."""
    w1, w2, wc, wt, nw, nb = params
    eps = 1e-5
    HIGH = lax.Precision.HIGHEST

    pooled = jnp.mean(x, axis=(1, 2))                              # (B, C)
    h = jax.nn.relu(jnp.dot(pooled, w1, precision=HIGH))
    gate = jax.nn.sigmoid(jnp.dot(h, w2, precision=HIGH))          # (B, C)
    xc = x * gate[:, None, None, :]

    d = lax.conv_general_dilated(
        xc, wc, window_strides=(2, 2), padding=[(1, 1), (1, 1)],
        dimension_numbers=('NHWC', 'HWIO', 'NHWC'), precision=HIGH)
    d = jax.nn.relu(d)

    # PyTorch ConvTranspose2d(k=4, s=2, p=1) == dilated conv with flipped kernel
    up = lax.conv_general_dilated(
        d, wt[::-1, ::-1, :, :], window_strides=(1, 1),
        padding=[(2, 2), (2, 2)], lhs_dilation=(2, 2),
        dimension_numbers=('NHWC', 'HWIO', 'NHWC'), precision=HIGH)
    up = jax.nn.relu(up)

    y = x + up
    mu = jnp.mean(y, axis=-1, keepdims=True)
    var = jnp.mean((y - mu) ** 2, axis=-1, keepdims=True)
    return (y - mu) / jnp.sqrt(var + eps) * nw[0] + nb[0]


def make_params(key, C, mlp_ratio=0.25, dtype=jnp.float32):
    Hd = max(1, int(C * mlp_ratio))
    ks = jax.random.split(key, 4)
    w1 = (jnp.sqrt(2.0 / C) * jax.random.normal(ks[0], (C, Hd))).astype(dtype)
    w2 = (jnp.sqrt(2.0 / Hd) * jax.random.normal(ks[1], (Hd, C))).astype(dtype)
    # HWIO layout, [kh, kw, c_in, c_out]  (== torch W[oc, ic, kh, kw] transposed)
    wc = (jnp.sqrt(2.0 / (9 * C)) * jax.random.normal(ks[2], (3, 3, C, C))).astype(dtype)
    wt = (jnp.sqrt(2.0 / (16 * C)) * jax.random.normal(ks[3], (4, 4, C, C))).astype(dtype)
    nw = jnp.ones((1, C), dtype)
    nb = jnp.zeros((1, C), dtype)
    return w1, w2, wc, wt, nw, nb


if __name__ == "__main__":
    key = jax.random.PRNGKey(0)
    kx, kx2, kp = jax.random.split(key, 3)

    C = 32
    params = make_params(kp, C)    # f32 params -> f32 MXU path; pass bf16 params for peak

    # square feature map (W/2 is a power of two)
    x = jax.random.normal(kx, (2, 16, 16, C), dtype=jnp.float32)
    out = jax.block_until_ready(adapter_layer(x, params))
    ref = adapter_layer_ref(x, params)
    assert out.shape == x.shape
    err = float(jnp.max(jnp.abs(out - ref)))
    assert err < 1e-3, f"square-map mismatch: {err}"

    # rectangular map, W/2 = 24 (multiple of 8, not a power of two): exercises
    # sublane-misaligned shifts and the non-power-of-two column masks.
    x2 = jax.random.normal(kx2, (2, 16, 48, C), dtype=jnp.float32)
    out2 = jax.block_until_ready(adapter_layer(x2, params))
    ref2 = adapter_layer_ref(x2, params)
    err2 = float(jnp.max(jnp.abs(out2 - ref2)))
    assert err2 < 1e-3, f"rect-map mismatch: {err2}"

    print("KERNEL_OK")
</pallas_src>

<mosaic_0001>
module attributes {stable_mosaic.version = 11 : i64} {
  func.func @adapter_kernel(%arg0: i32, %arg1: memref<1x8x2x8x64xf32, #tpu.memory_space<vmem>>, %arg2: memref<32x8xf32, #tpu.memory_space<vmem>>, %arg3: memref<8x32xf32, #tpu.memory_space<vmem>>, %arg4: memref<288x32xf32, #tpu.memory_space<vmem>>, %arg5: memref<4x128x32xf32, #tpu.memory_space<vmem>>, %arg6: memref<1x32xf32, #tpu.memory_space<vmem>>, %arg7: memref<1x32xf32, #tpu.memory_space<vmem>>, %arg8: memref<1x8x2x8x64xf32, #tpu.memory_space<vmem>>) attributes {dimension_semantics = [#tpu.dimension_semantics<parallel>], iteration_bounds = array<i64: 2>, scalar_prefetch = 0 : i64, scratch_operands = 0 : i64, tpu.core_type = #tpu.core_type<tc>, window_params = [{transform_indices = @transform_0, window_bounds = array<i64: 1, 8, 2, 8, 64>}, {pipeline_mode = #tpu.pipeline_mode<synchronous>, transform_indices = @transform_1, window_bounds = array<i64: 32, 8>}, {pipeline_mode = #tpu.pipeline_mode<synchronous>, transform_indices = @transform_2, window_bounds = array<i64: 8, 32>}, {pipeline_mode = #tpu.pipeline_mode<synchronous>, transform_indices = @transform_3, window_bounds = array<i64: 288, 32>}, {pipeline_mode = #tpu.pipeline_mode<synchronous>, transform_indices = @transform_4, window_bounds = array<i64: 4, 128, 32>}, {pipeline_mode = #tpu.pipeline_mode<synchronous>, transform_indices = @transform_5, window_bounds = array<i64: 1, 32>}, {pipeline_mode = #tpu.pipeline_mode<synchronous>, transform_indices = @transform_6, window_bounds = array<i64: 1, 32>}, {transform_indices = @transform_7, window_bounds = array<i64: 1, 8, 2, 8, 64>}]} {
    %c0 = arith.constant 0 : index
    %c0_0 = arith.constant 0 : index
    %c0_1 = arith.constant 0 : index
    %c0_2 = arith.constant 0 : index
    %c0_3 = arith.constant 0 : index
    %0 = vector.load %arg1[%c0, %c0_0, %c0_1, %c0_2, %c0_3] : memref<1x8x2x8x64xf32, #tpu.memory_space<vmem>>, vector<1x8x2x8x64xf32>
    %1 = vector.shape_cast %0 : vector<1x8x2x8x64xf32> to vector<8x2x8x64xf32>
    %2 = vector.extract_strided_slice %1 {offsets = [0, 0, 0, 0], sizes = [8, 1, 8, 64], strides = [1, 1, 1, 1]} : vector<8x2x8x64xf32> to vector<8x1x8x64xf32>
    %3 = vector.shape_cast %2 : vector<8x1x8x64xf32> to vector<8x8x64xf32>
    %4 = vector.shape_cast %3 : vector<8x8x64xf32> to vector<64x64xf32>
    %5 = vector.extract_strided_slice %1 {offsets = [0, 1, 0, 0], sizes = [8, 1, 8, 64], strides = [1, 1, 1, 1]} : vector<8x2x8x64xf32> to vector<8x1x8x64xf32>
    %6 = vector.shape_cast %5 : vector<8x1x8x64xf32> to vector<8x8x64xf32>
    %7 = vector.shape_cast %6 : vector<8x8x64xf32> to vector<64x64xf32>
    %8 = vector.extract_strided_slice %4 {offsets = [0, 32], sizes = [64, 32], strides = [1, 1]} : vector<64x64xf32> to vector<64x32xf32>
    %9 = vector.extract_strided_slice %7 {offsets = [0, 0], sizes = [64, 32], strides = [1, 1]} : vector<64x64xf32> to vector<64x32xf32>
    %10 = vector.extract_strided_slice %7 {offsets = [0, 32], sizes = [64, 32], strides = [1, 1]} : vector<64x64xf32> to vector<64x32xf32>
    %11 = tpu.iota {dimensions = array<i32: 0>} : vector<8x8x1xi32>
    %12 = vector.shape_cast %11 : vector<8x8x1xi32> to vector<64x1xi32>
    %13 = tpu.iota {dimensions = array<i32: 1>} : vector<8x8x1xi32>
    %14 = vector.shape_cast %13 : vector<8x8x1xi32> to vector<64x1xi32>
    %c1_i32 = arith.constant 1 : i32
    %15 = vector.broadcast %c1_i32 : i32 to vector<64x1xi32>
    %16 = arith.cmpi sge, %12, %15 : vector<64x1xi32>
    %c6_i32 = arith.constant 6 : i32
    %17 = vector.broadcast %c6_i32 : i32 to vector<64x1xi32>
    %18 = arith.cmpi sle, %12, %17 : vector<64x1xi32>
    %c1_i32_4 = arith.constant 1 : i32
    %19 = vector.broadcast %c1_i32_4 : i32 to vector<64x1xi32>
    %20 = arith.cmpi sge, %14, %19 : vector<64x1xi32>
    %c6_i32_5 = arith.constant 6 : i32
    %21 = vector.broadcast %c6_i32_5 : i32 to vector<64x1xi32>
    %22 = arith.cmpi sle, %14, %21 : vector<64x1xi32>
    %c9_i32 = arith.constant 9 : i32
    %23 = tpu.dynamic_rotate %10 by %c9_i32 dim 0 : vector<64x32xf32>, i32 -> vector<64x32xf32>
    %24 = arith.andi %16, %20 : vector<64x1xi1>
    %cst = arith.constant 0.000000e+00 : f32
    %25 = vector.shape_cast %24 : vector<64x1xi1> to vector<64x1xi1>
    %26 = vector.broadcast %25 : vector<64x1xi1> to vector<64x32xi1>
    %27 = vector.broadcast %cst : f32 to vector<64x32xf32>
    %28 = arith.select %26, %23, %27 : vector<64x32xi1>, vector<64x32xf32>
    %c8_i32 = arith.constant 8 : i32
    %29 = tpu.dynamic_rotate %9 by %c8_i32 dim 0 : vector<64x32xf32>, i32 -> vector<64x32xf32>
    %cst_6 = arith.constant 0.000000e+00 : f32
    %30 = vector.shape_cast %16 : vector<64x1xi1> to vector<64x1xi1>
    %31 = vector.broadcast %30 : vector<64x1xi1> to vector<64x32xi1>
    %32 = vector.broadcast %cst_6 : f32 to vector<64x32xf32>
    %33 = arith.select %31, %29, %32 : vector<64x32xi1>, vector<64x32xf32>
    %c8_i32_7 = arith.constant 8 : i32
    %34 = tpu.dynamic_rotate %10 by %c8_i32_7 dim 0 : vector<64x32xf32>, i32 -> vector<64x32xf32>
    %cst_8 = arith.constant 0.000000e+00 : f32
    %35 = vector.shape_cast %16 : vector<64x1xi1> to vector<64x1xi1>
    %36 = vector.broadcast %35 : vector<64x1xi1> to vector<64x32xi1>
    %37 = vector.broadcast %cst_8 : f32 to vector<64x32xf32>
    %38 = arith.select %36, %34, %37 : vector<64x32xi1>, vector<64x32xf32>
    %c1_i32_9 = arith.constant 1 : i32
    %39 = tpu.dynamic_rotate %8 by %c1_i32_9 dim 0 : vector<64x32xf32>, i32 -> vector<64x32xf32>
    %cst_10 = arith.constant 0.000000e+00 : f32
    %40 = vector.shape_cast %20 : vector<64x1xi1> to vector<64x1xi1>
    %41 = vector.broadcast %40 : vector<64x1xi1> to vector<64x32xi1>
    %42 = vector.broadcast %cst_10 : f32 to vector<64x32xf32>
    %43 = arith.select %41, %39, %42 : vector<64x32xi1>, vector<64x32xf32>
    %c1_i32_11 = arith.constant 1 : i32
    %44 = tpu.dynamic_rotate %10 by %c1_i32_11 dim 0 : vector<64x32xf32>, i32 -> vector<64x32xf32>
    %cst_12 = arith.constant 0.000000e+00 : f32
    %45 = vector.shape_cast %20 : vector<64x1xi1> to vector<64x1xi1>
    %46 = vector.broadcast %45 : vector<64x1xi1> to vector<64x32xi1>
    %47 = vector.broadcast %cst_12 : f32 to vector<64x32xf32>
    %48 = arith.select %46, %44, %47 : vector<64x32xi1>, vector<64x32xf32>
    %49 = tpu.concatenate %28, %33, %38, %43, %4, %48, %7 in 1 : vector<64x32xf32>, vector<64x32xf32>, vector<64x32xf32>, vector<64x32xf32>, vector<64x64xf32>, vector<64x32xf32>, vector<64x64xf32> -> vector<64x288xf32>
    %50 = arith.addf %4, %7 : vector<64x64xf32>
    %cst_13 = arith.constant dense<0.000000e+00> : vector<64xf32>
    %51 = vector.multi_reduction <add>, %50, %cst_13 [0] : vector<64x64xf32> to vector<64xf32>
    %52 = vector.shape_cast %51 : vector<64xf32> to vector<1x64xf32>
    %53 = vector.extract_strided_slice %52 {offsets = [0, 0], sizes = [1, 32], strides = [1, 1]} : vector<1x64xf32> to vector<1x32xf32>
    %54 = vector.extract_strided_slice %52 {offsets = [0, 32], sizes = [1, 32], strides = [1, 1]} : vector<1x64xf32> to vector<1x32xf32>
    %55 = arith.addf %53, %54 : vector<1x32xf32>
    %cst_14 = arith.constant 3.906250e-03 : f32
    %56 = vector.broadcast %cst_14 : f32 to vector<1x32xf32>
    %57 = arith.mulf %55, %56 : vector<1x32xf32>
    %c0_15 = arith.constant 0 : index
    %c0_16 = arith.constant 0 : index
    %58 = vector.load %arg2[%c0_15, %c0_16] : memref<32x8xf32, #tpu.memory_space<vmem>>, vector<32x8xf32>
    %cst_17 = arith.constant dense<0.000000e+00> : vector<1x8xf32>
    %59 = tpu.matmul %57, %58, %cst_17 {dimension_numbers = #tpu.dot_dimension_numbers<[1], [0], [0], [1], [0, 0, 1, 1], [], []>} : vector<1x32xf32>, vector<32x8xf32>, vector<1x8xf32> -> vector<1x8xf32>
    %cst_18 = arith.constant 0.000000e+00 : f32
    %60 = vector.broadcast %cst_18 : f32 to vector<1x8xf32>
    %61 = arith.maximumf %59, %60 : vector<1x8xf32>
    %c0_19 = arith.constant 0 : index
    %c0_20 = arith.constant 0 : index
    %62 = vector.load %arg3[%c0_19, %c0_20] : memref<8x32xf32, #tpu.memory_space<vmem>>, vector<8x32xf32>
    %cst_21 = arith.constant dense<0.000000e+00> : vector<1x32xf32>
    %63 = tpu.matmul %61, %62, %cst_21 {dimension_numbers = #tpu.dot_dimension_numbers<[1], [0], [0], [1], [0, 0, 1, 1], [], []>} : vector<1x8xf32>, vector<8x32xf32>, vector<1x32xf32> -> vector<1x32xf32>
    %cst_22 = arith.constant 0.000000e+00 : f32
    %64 = vector.broadcast %cst_22 : f32 to vector<1x32xf32>
    %65 = arith.subf %64, %63 : vector<1x32xf32>
    %66 = math.exp %65 : vector<1x32xf32>
    %cst_23 = arith.constant 1.000000e+00 : f32
    %67 = vector.broadcast %cst_23 : f32 to vector<1x32xf32>
    %68 = arith.addf %67, %66 : vector<1x32xf32>
    %cst_24 = arith.constant 1.000000e+00 : f32
    %69 = vector.broadcast %cst_24 : f32 to vector<1x32xf32>
    %70 = arith.divf %69, %68 : vector<1x32xf32>
    %71 = tpu.concatenate %70, %70, %70, %70, %70, %70, %70, %70, %70 in 1 : vector<1x32xf32>, vector<1x32xf32>, vector<1x32xf32>, vector<1x32xf32>, vector<1x32xf32>, vector<1x32xf32>, vector<1x32xf32>, vector<1x32xf32>, vector<1x32xf32> -> vector<1x288xf32>
    %72 = vector.broadcast %71 : vector<1x288xf32> to vector<64x288xf32>
    %73 = arith.mulf %49, %72 : vector<64x288xf32>
    %c0_25 = arith.constant 0 : index
    %c0_26 = arith.constant 0 : index
    %74 = vector.load %arg4[%c0_25, %c0_26] : memref<288x32xf32, #tpu.memory_space<vmem>>, vector<288x32xf32>
    %cst_27 = arith.constant dense<0.000000e+00> : vector<64x32xf32>
    %75 = tpu.matmul %73, %74, %cst_27 {dimension_numbers = #tpu.dot_dimension_numbers<[1], [0], [0], [1], [0, 0, 1, 1], [], []>} : vector<64x288xf32>, vector<288x32xf32>, vector<64x32xf32> -> vector<64x32xf32>
    %cst_28 = arith.constant 0.000000e+00 : f32
    %76 = vector.broadcast %cst_28 : f32 to vector<64x32xf32>
    %77 = arith.maximumf %75, %76 : vector<64x32xf32>
    %c8_i32_29 = arith.constant 8 : i32
    %78 = tpu.dynamic_rotate %77 by %c8_i32_29 dim 0 : vector<64x32xf32>, i32 -> vector<64x32xf32>
    %cst_30 = arith.constant 0.000000e+00 : f32
    %79 = vector.shape_cast %16 : vector<64x1xi1> to vector<64x1xi1>
    %80 = vector.broadcast %79 : vector<64x1xi1> to vector<64x32xi1>
    %81 = vector.broadcast %cst_30 : f32 to vector<64x32xf32>
    %82 = arith.select %80, %78, %81 : vector<64x32xi1>, vector<64x32xf32>
    %c1_i32_31 = arith.constant 1 : i32
    %83 = tpu.dynamic_rotate %77 by %c1_i32_31 dim 0 : vector<64x32xf32>, i32 -> vector<64x32xf32>
    %cst_32 = arith.constant 0.000000e+00 : f32
    %84 = vector.shape_cast %20 : vector<64x1xi1> to vector<64x1xi1>
    %85 = vector.broadcast %84 : vector<64x1xi1> to vector<64x32xi1>
    %86 = vector.broadcast %cst_32 : f32 to vector<64x32xf32>
    %87 = arith.select %85, %83, %86 : vector<64x32xi1>, vector<64x32xf32>
    %c9_i32_33 = arith.constant 9 : i32
    %88 = tpu.dynamic_rotate %77 by %c9_i32_33 dim 0 : vector<64x32xf32>, i32 -> vector<64x32xf32>
    %89 = arith.andi %16, %20 : vector<64x1xi1>
    %cst_34 = arith.constant 0.000000e+00 : f32
    %90 = vector.shape_cast %89 : vector<64x1xi1> to vector<64x1xi1>
    %91 = vector.broadcast %90 : vector<64x1xi1> to vector<64x32xi1>
    %92 = vector.broadcast %cst_34 : f32 to vector<64x32xf32>
    %93 = arith.select %91, %88, %92 : vector<64x32xi1>, vector<64x32xf32>
    %c56_i32 = arith.constant 56 : i32
    %94 = tpu.dynamic_rotate %77 by %c56_i32 dim 0 : vector<64x32xf32>, i32 -> vector<64x32xf32>
    %cst_35 = arith.constant 0.000000e+00 : f32
    %95 = vector.shape_cast %18 : vector<64x1xi1> to vector<64x1xi1>
    %96 = vector.broadcast %95 : vector<64x1xi1> to vector<64x32xi1>
    %97 = vector.broadcast %cst_35 : f32 to vector<64x32xf32>
    %98 = arith.select %96, %94, %97 : vector<64x32xi1>, vector<64x32xf32>
    %c63_i32 = arith.constant 63 : i32
    %99 = tpu.dynamic_rotate %77 by %c63_i32 dim 0 : vector<64x32xf32>, i32 -> vector<64x32xf32>
    %cst_36 = arith.constant 0.000000e+00 : f32
    %100 = vector.shape_cast %22 : vector<64x1xi1> to vector<64x1xi1>
    %101 = vector.broadcast %100 : vector<64x1xi1> to vector<64x32xi1>
    %102 = vector.broadcast %cst_36 : f32 to vector<64x32xf32>
    %103 = arith.select %101, %99, %102 : vector<64x32xi1>, vector<64x32xf32>
    %c7_i32 = arith.constant 7 : i32
    %104 = tpu.dynamic_rotate %77 by %c7_i32 dim 0 : vector<64x32xf32>, i32 -> vector<64x32xf32>
    %105 = arith.andi %16, %22 : vector<64x1xi1>
    %cst_37 = arith.constant 0.000000e+00 : f32
    %106 = vector.shape_cast %105 : vector<64x1xi1> to vector<64x1xi1>
    %107 = vector.broadcast %106 : vector<64x1xi1> to vector<64x32xi1>
    %108 = vector.broadcast %cst_37 : f32 to vector<64x32xf32>
    %109 = arith.select %107, %104, %108 : vector<64x32xi1>, vector<64x32xf32>
    %c57_i32 = arith.constant 57 : i32
    %110 = tpu.dynamic_rotate %77 by %c57_i32 dim 0 : vector<64x32xf32>, i32 -> vector<64x32xf32>
    %111 = arith.andi %18, %20 : vector<64x1xi1>
    %cst_38 = arith.constant 0.000000e+00 : f32
    %112 = vector.shape_cast %111 : vector<64x1xi1> to vector<64x1xi1>
    %113 = vector.broadcast %112 : vector<64x1xi1> to vector<64x32xi1>
    %114 = vector.broadcast %cst_38 : f32 to vector<64x32xf32>
    %115 = arith.select %113, %110, %114 : vector<64x32xi1>, vector<64x32xf32>
    %c55_i32 = arith.constant 55 : i32
    %116 = tpu.dynamic_rotate %77 by %c55_i32 dim 0 : vector<64x32xf32>, i32 -> vector<64x32xf32>
    %117 = arith.andi %18, %22 : vector<64x1xi1>
    %cst_39 = arith.constant 0.000000e+00 : f32
    %118 = vector.shape_cast %117 : vector<64x1xi1> to vector<64x1xi1>
    %119 = vector.broadcast %118 : vector<64x1xi1> to vector<64x32xi1>
    %120 = vector.broadcast %cst_39 : f32 to vector<64x32xf32>
    %121 = arith.select %119, %116, %120 : vector<64x32xi1>, vector<64x32xf32>
    %122 = tpu.concatenate %77, %82, %87, %93 in 1 : vector<64x32xf32>, vector<64x32xf32>, vector<64x32xf32>, vector<64x32xf32> -> vector<64x128xf32>
    %c0_40 = arith.constant 0 : index
    %c0_41 = arith.constant 0 : index
    %c0_42 = arith.constant 0 : index
    %123 = vector.load %arg5[%c0_40, %c0_41, %c0_42] : memref<4x128x32xf32, #tpu.memory_space<vmem>>, vector<1x128x32xf32>
    %124 = vector.shape_cast %123 : vector<1x128x32xf32> to vector<128x32xf32>
    %cst_43 = arith.constant dense<0.000000e+00> : vector<64x32xf32>
    %125 = tpu.matmul %122, %124, %cst_43 {dimension_numbers = #tpu.dot_dimension_numbers<[1], [0], [0], [1], [0, 0, 1, 1], [], []>} : vector<64x128xf32>, vector<128x32xf32>, vector<64x32xf32> -> vector<64x32xf32>
    %126 = tpu.concatenate %103, %77, %109, %82 in 1 : vector<64x32xf32>, vector<64x32xf32>, vector<64x32xf32>, vector<64x32xf32> -> vector<64x128xf32>
    %c1 = arith.constant 1 : index
    %c0_44 = arith.constant 0 : index
    %c0_45 = arith.constant 0 : index
    %127 = vector.load %arg5[%c1, %c0_44, %c0_45] : memref<4x128x32xf32, #tpu.memory_space<vmem>>, vector<1x128x32xf32>
    %128 = vector.shape_cast %127 : vector<1x128x32xf32> to vector<128x32xf32>
    %cst_46 = arith.constant dense<0.000000e+00> : vector<64x32xf32>
    %129 = tpu.matmul %126, %128, %cst_46 {dimension_numbers = #tpu.dot_dimension_numbers<[1], [0], [0], [1], [0, 0, 1, 1], [], []>} : vector<64x128xf32>, vector<128x32xf32>, vector<64x32xf32> -> vector<64x32xf32>
    %130 = tpu.concatenate %98, %77, %115, %87 in 1 : vector<64x32xf32>, vector<64x32xf32>, vector<64x32xf32>, vector<64x32xf32> -> vector<64x128xf32>
    %c2 = arith.constant 2 : index
    %c0_47 = arith.constant 0 : index
    %c0_48 = arith.constant 0 : index
    %131 = vector.load %arg5[%c2, %c0_47, %c0_48] : memref<4x128x32xf32, #tpu.memory_space<vmem>>, vector<1x128x32xf32>
    %132 = vector.shape_cast %131 : vector<1x128x32xf32> to vector<128x32xf32>
    %cst_49 = arith.constant dense<0.000000e+00> : vector<64x32xf32>
    %133 = tpu.matmul %130, %132, %cst_49 {dimension_numbers = #tpu.dot_dimension_numbers<[1], [0], [0], [1], [0, 0, 1, 1], [], []>} : vector<64x128xf32>, vector<128x32xf32>, vector<64x32xf32> -> vector<64x32xf32>
    %134 = tpu.concatenate %121, %98, %103, %77 in 1 : vector<64x32xf32>, vector<64x32xf32>, vector<64x32xf32>, vector<64x32xf32> -> vector<64x128xf32>
    %c3 = arith.constant 3 : index
    %c0_50 = arith.constant 0 : index
    %c0_51 = arith.constant 0 : index
    %135 = vector.load %arg5[%c3, %c0_50, %c0_51] : memref<4x128x32xf32, #tpu.memory_space<vmem>>, vector<1x128x32xf32>
    %136 = vector.shape_cast %135 : vector<1x128x32xf32> to vector<128x32xf32>
    %cst_52 = arith.constant dense<0.000000e+00> : vector<64x32xf32>
    %137 = tpu.matmul %134, %136, %cst_52 {dimension_numbers = #tpu.dot_dimension_numbers<[1], [0], [0], [1], [0, 0, 1, 1], [], []>} : vector<64x128xf32>, vector<128x32xf32>, vector<64x32xf32> -> vector<64x32xf32>
    %c0_53 = arith.constant 0 : index
    %c0_54 = arith.constant 0 : index
    %138 = vector.load %arg6[%c0_53, %c0_54] : memref<1x32xf32, #tpu.memory_space<vmem>>, vector<1x32xf32>
    %c0_55 = arith.constant 0 : index
    %c0_56 = arith.constant 0 : index
    %139 = vector.load %arg7[%c0_55, %c0_56] : memref<1x32xf32, #tpu.memory_space<vmem>>, vector<1x32xf32>
    %140 = vector.extract_strided_slice %4 {offsets = [0, 0], sizes = [64, 32], strides = [1, 1]} : vector<64x64xf32> to vector<64x32xf32>
    %cst_57 = arith.constant 0.000000e+00 : f32
    %141 = vector.broadcast %cst_57 : f32 to vector<64x32xf32>
    %142 = arith.maximumf %125, %141 : vector<64x32xf32>
    %143 = arith.addf %140, %142 : vector<64x32xf32>
    %cst_58 = arith.constant dense<0.000000e+00> : vector<64xf32>
    %144 = vector.multi_reduction <add>, %143, %cst_58 [1] : vector<64x32xf32> to vector<64xf32>
    %145 = vector.shape_cast %144 : vector<64xf32> to vector<64x1xf32>
    %cst_59 = arith.constant 3.125000e-02 : f32
    %146 = vector.broadcast %cst_59 : f32 to vector<64x1xf32>
    %147 = arith.mulf %145, %146 : vector<64x1xf32>
    %148 = vector.broadcast %147 : vector<64x1xf32> to vector<64x32xf32>
    %149 = arith.subf %143, %148 : vector<64x32xf32>
    %150 = arith.mulf %149, %149 : vector<64x32xf32>
    %cst_60 = arith.constant dense<0.000000e+00> : vector<64xf32>
    %151 = vector.multi_reduction <add>, %150, %cst_60 [1] : vector<64x32xf32> to vector<64xf32>
    %152 = vector.shape_cast %151 : vector<64xf32> to vector<64x1xf32>
    %cst_61 = arith.constant 3.125000e-02 : f32
    %153 = vector.broadcast %cst_61 : f32 to vector<64x1xf32>
    %154 = arith.mulf %152, %153 : vector<64x1xf32>
    %cst_62 = arith.constant 9.99999974E-6 : f32
    %155 = vector.broadcast %cst_62 : f32 to vector<64x1xf32>
    %156 = arith.addf %154, %155 : vector<64x1xf32>
    %157 = math.rsqrt %156 : vector<64x1xf32>
    %158 = vector.broadcast %157 : vector<64x1xf32> to vector<64x32xf32>
    %159 = arith.mulf %149, %158 : vector<64x32xf32>
    %160 = vector.broadcast %138 : vector<1x32xf32> to vector<64x32xf32>
    %161 = arith.mulf %159, %160 : vector<64x32xf32>
    %162 = vector.broadcast %139 : vector<1x32xf32> to vector<64x32xf32>
    %163 = arith.addf %161, %162 : vector<64x32xf32>
    %164 = vector.extract_strided_slice %4 {offsets = [0, 32], sizes = [64, 32], strides = [1, 1]} : vector<64x64xf32> to vector<64x32xf32>
    %cst_63 = arith.constant 0.000000e+00 : f32
    %165 = vector.broadcast %cst_63 : f32 to vector<64x32xf32>
    %166 = arith.maximumf %129, %165 : vector<64x32xf32>
    %167 = arith.addf %164, %166 : vector<64x32xf32>
    %cst_64 = arith.constant dense<0.000000e+00> : vector<64xf32>
    %168 = vector.multi_reduction <add>, %167, %cst_64 [1] : vector<64x32xf32> to vector<64xf32>
    %169 = vector.shape_cast %168 : vector<64xf32> to vector<64x1xf32>
    %cst_65 = arith.constant 3.125000e-02 : f32
    %170 = vector.broadcast %cst_65 : f32 to vector<64x1xf32>
    %171 = arith.mulf %169, %170 : vector<64x1xf32>
    %172 = vector.broadcast %171 : vector<64x1xf32> to vector<64x32xf32>
    %173 = arith.subf %167, %172 : vector<64x32xf32>
    %174 = arith.mulf %173, %173 : vector<64x32xf32>
    %cst_66 = arith.constant dense<0.000000e+00> : vector<64xf32>
    %175 = vector.multi_reduction <add>, %174, %cst_66 [1] : vector<64x32xf32> to vector<64xf32>
    %176 = vector.shape_cast %175 : vector<64xf32> to vector<64x1xf32>
    %cst_67 = arith.constant 3.125000e-02 : f32
    %177 = vector.broadcast %cst_67 : f32 to vector<64x1xf32>
    %178 = arith.mulf %176, %177 : vector<64x1xf32>
    %cst_68 = arith.constant 9.99999974E-6 : f32
    %179 = vector.broadcast %cst_68 : f32 to vector<64x1xf32>
    %180 = arith.addf %178, %179 : vector<64x1xf32>
    %181 = math.rsqrt %180 : vector<64x1xf32>
    %182 = vector.broadcast %181 : vector<64x1xf32> to vector<64x32xf32>
    %183 = arith.mulf %173, %182 : vector<64x32xf32>
    %184 = vector.broadcast %138 : vector<1x32xf32> to vector<64x32xf32>
    %185 = arith.mulf %183, %184 : vector<64x32xf32>
    %186 = vector.broadcast %139 : vector<1x32xf32> to vector<64x32xf32>
    %187 = arith.addf %185, %186 : vector<64x32xf32>
    %188 = vector.extract_strided_slice %7 {offsets = [0, 0], sizes = [64, 32], strides = [1, 1]} : vector<64x64xf32> to vector<64x32xf32>
    %cst_69 = arith.constant 0.000000e+00 : f32
    %189 = vector.broadcast %cst_69 : f32 to vector<64x32xf32>
    %190 = arith.maximumf %133, %189 : vector<64x32xf32>
    %191 = arith.addf %188, %190 : vector<64x32xf32>
    %cst_70 = arith.constant dense<0.000000e+00> : vector<64xf32>
    %192 = vector.multi_reduction <add>, %191, %cst_70 [1] : vector<64x32xf32> to vector<64xf32>
    %193 = vector.shape_cast %192 : vector<64xf32> to vector<64x1xf32>
    %cst_71 = arith.constant 3.125000e-02 : f32
    %194 = vector.broadcast %cst_71 : f32 to vector<64x1xf32>
    %195 = arith.mulf %193, %194 : vector<64x1xf32>
    %196 = vector.broadcast %195 : vector<64x1xf32> to vector<64x32xf32>
    %197 = arith.subf %191, %196 : vector<64x32xf32>
    %198 = arith.mulf %197, %197 : vector<64x32xf32>
    %cst_72 = arith.constant dense<0.000000e+00> : vector<64xf32>
    %199 = vector.multi_reduction <add>, %198, %cst_72 [1] : vector<64x32xf32> to vector<64xf32>
    %200 = vector.shape_cast %199 : vector<64xf32> to vector<64x1xf32>
    %cst_73 = arith.constant 3.125000e-02 : f32
    %201 = vector.broadcast %cst_73 : f32 to vector<64x1xf32>
    %202 = arith.mulf %200, %201 : vector<64x1xf32>
    %cst_74 = arith.constant 9.99999974E-6 : f32
    %203 = vector.broadcast %cst_74 : f32 to vector<64x1xf32>
    %204 = arith.addf %202, %203 : vector<64x1xf32>
    %205 = math.rsqrt %204 : vector<64x1xf32>
    %206 = vector.broadcast %205 : vector<64x1xf32> to vector<64x32xf32>
    %207 = arith.mulf %197, %206 : vector<64x32xf32>
    %208 = vector.broadcast %138 : vector<1x32xf32> to vector<64x32xf32>
    %209 = arith.mulf %207, %208 : vector<64x32xf32>
    %210 = vector.broadcast %139 : vector<1x32xf32> to vector<64x32xf32>
    %211 = arith.addf %209, %210 : vector<64x32xf32>
    %212 = vector.extract_strided_slice %7 {offsets = [0, 32], sizes = [64, 32], strides = [1, 1]} : vector<64x64xf32> to vector<64x32xf32>
    %cst_75 = arith.constant 0.000000e+00 : f32
    %213 = vector.broadcast %cst_75 : f32 to vector<64x32xf32>
    %214 = arith.maximumf %137, %213 : vector<64x32xf32>
    %215 = arith.addf %212, %214 : vector<64x32xf32>
    %cst_76 = arith.constant dense<0.000000e+00> : vector<64xf32>
    %216 = vector.multi_reduction <add>, %215, %cst_76 [1] : vector<64x32xf32> to vector<64xf32>
    %217 = vector.shape_cast %216 : vector<64xf32> to vector<64x1xf32>
    %cst_77 = arith.constant 3.125000e-02 : f32
    %218 = vector.broadcast %cst_77 : f32 to vector<64x1xf32>
    %219 = arith.mulf %217, %218 : vector<64x1xf32>
    %220 = vector.broadcast %219 : vector<64x1xf32> to vector<64x32xf32>
    %221 = arith.subf %215, %220 : vector<64x32xf32>
    %222 = arith.mulf %221, %221 : vector<64x32xf32>
    %cst_78 = arith.constant dense<0.000000e+00> : vector<64xf32>
    %223 = vector.multi_reduction <add>, %222, %cst_78 [1] : vector<64x32xf32> to vector<64xf32>
    %224 = vector.shape_cast %223 : vector<64xf32> to vector<64x1xf32>
    %cst_79 = arith.constant 3.125000e-02 : f32
    %225 = vector.broadcast %cst_79 : f32 to vector<64x1xf32>
    %226 = arith.mulf %224, %225 : vector<64x1xf32>
    %cst_80 = arith.constant 9.99999974E-6 : f32
    %227 = vector.broadcast %cst_80 : f32 to vector<64x1xf32>
    %228 = arith.addf %226, %227 : vector<64x1xf32>
    %229 = math.rsqrt %228 : vector<64x1xf32>
    %230 = vector.broadcast %229 : vector<64x1xf32> to vector<64x32xf32>
    %231 = arith.mulf %221, %230 : vector<64x32xf32>
    %232 = vector.broadcast %138 : vector<1x32xf32> to vector<64x32xf32>
    %233 = arith.mulf %231, %232 : vector<64x32xf32>
    %234 = vector.broadcast %139 : vector<1x32xf32> to vector<64x32xf32>
    %235 = arith.addf %233, %234 : vector<64x32xf32>
    %236 = tpu.concatenate %163, %187 in 1 : vector<64x32xf32>, vector<64x32xf32> -> vector<64x64xf32>
    %237 = vector.shape_cast %236 : vector<64x64xf32> to vector<8x8x64xf32>
    %238 = tpu.concatenate %211, %235 in 1 : vector<64x32xf32>, vector<64x32xf32> -> vector<64x64xf32>
    %239 = vector.shape_cast %238 : vector<64x64xf32> to vector<8x8x64xf32>
    %c0_81 = arith.constant 0 : index
    %c0_82 = arith.constant 0 : index
    %c0_83 = arith.constant 0 : index
    %c0_84 = arith.constant 0 : index
    %c0_85 = arith.constant 0 : index
    %240 = vector.load %arg8[%c0_81, %c0_82, %c0_83, %c0_84, %c0_85] : memref<1x8x2x8x64xf32, #tpu.memory_space<vmem>>, vector<1x8x1x8x64xf32>
    %241 = vector.shape_cast %240 : vector<1x8x1x8x64xf32> to vector<8x8x64xf32>
    %242 = vector.shape_cast %237 : vector<8x8x64xf32> to vector<1x8x1x8x64xf32>
    tpu.vector_store %arg8[%c0_81, %c0_82, %c0_83, %c0_84, %c0_85], %242 {strides = array<i32>} : memref<1x8x2x8x64xf32, #tpu.memory_space<vmem>>, vector<1x8x1x8x64xf32>,
    %c0_86 = arith.constant 0 : index
    %c0_87 = arith.constant 0 : index
    %c1_88 = arith.constant 1 : index
    %c0_89 = arith.constant 0 : index
    %c0_90 = arith.constant 0 : index
    %243 = vector.load %arg8[%c0_86, %c0_87, %c1_88, %c0_89, %c0_90] : memref<1x8x2x8x64xf32, #tpu.memory_space<vmem>>, vector<1x8x1x8x64xf32>
    %244 = vector.shape_cast %243 : vector<1x8x1x8x64xf32> to vector<8x8x64xf32>
    %245 = vector.shape_cast %239 : vector<8x8x64xf32> to vector<1x8x1x8x64xf32>
    tpu.vector_store %arg8[%c0_86, %c0_87, %c1_88, %c0_89, %c0_90], %245 {strides = array<i32>} : memref<1x8x2x8x64xf32, #tpu.memory_space<vmem>>, vector<1x8x1x8x64xf32>,
    return
  }
  func.func @transform_0(%arg0: i32) -> (i32, i32, i32, i32, i32) {
    %c0_i32 = arith.constant 0 : i32
    %c0_i32_0 = arith.constant 0 : i32
    %c0_i32_1 = arith.constant 0 : i32
    %c0_i32_2 = arith.constant 0 : i32
    %c0_i32_3 = arith.constant 0 : i32
    return %arg0, %c0_i32, %c0_i32_0, %c0_i32_1, %c0_i32_2 : i32, i32, i32, i32, i32
  }
  func.func @transform_1(%arg0: i32) -> (i32, i32) {
    %c0_i32 = arith.constant 0 : i32
    %c0_i32_0 = arith.constant 0 : i32
    %c0_i32_1 = arith.constant 0 : i32
    return %c0_i32, %c0_i32_0 : i32, i32
  }
  func.func @transform_2(%arg0: i32) -> (i32, i32) {
    %c0_i32 = arith.constant 0 : i32
    %c0_i32_0 = arith.constant 0 : i32
    %c0_i32_1 = arith.constant 0 : i32
    return %c0_i32, %c0_i32_0 : i32, i32
  }
  func.func @transform_3(%arg0: i32) -> (i32, i32) {
    %c0_i32 = arith.constant 0 : i32
    %c0_i32_0 = arith.constant 0 : i32
    %c0_i32_1 = arith.constant 0 : i32
    return %c0_i32, %c0_i32_0 : i32, i32
  }
  func.func @transform_4(%arg0: i32) -> (i32, i32, i32) {
    %c0_i32 = arith.constant 0 : i32
    %c0_i32_0 = arith.constant 0 : i32
    %c0_i32_1 = arith.constant 0 : i32
    %c0_i32_2 = arith.constant 0 : i32
    return %c0_i32, %c0_i32_0, %c0_i32_1 : i32, i32, i32
  }
  func.func @transform_5(%arg0: i32) -> (i32, i32) {
    %c0_i32 = arith.constant 0 : i32
    %c0_i32_0 = arith.constant 0 : i32
    %c0_i32_1 = arith.constant 0 : i32
    return %c0_i32, %c0_i32_0 : i32, i32
  }
  func.func @transform_6(%arg0: i32) -> (i32, i32) {
    %c0_i32 = arith.constant 0 : i32
    %c0_i32_0 = arith.constant 0 : i32
    %c0_i32_1 = arith.constant 0 : i32
    return %c0_i32, %c0_i32_0 : i32, i32
  }
  func.func @transform_7(%arg0: i32) -> (i32, i32, i32, i32, i32) {
    %c0_i32 = arith.constant 0 : i32
    %c0_i32_0 = arith.constant 0 : i32
    %c0_i32_1 = arith.constant 0 : i32
    %c0_i32_2 = arith.constant 0 : i32
    %c0_i32_3 = arith.constant 0 : i32
    return %arg0, %c0_i32, %c0_i32_0, %c0_i32_1, %c0_i32_2 : i32, i32, i32, i32, i32
  }
}

</mosaic_0001>

<llo_original>
// kernel: tpu_custom_call.1
$region0: #{tpu_custom_call.1}
  #allocation0 [shape = 'u32[]', space=smem, size = 0x4, offset = 0x4, fixed_abs, tag = 'smem constant byte address 0x4 - core index']
  #allocation1 [shape = 'u32[144,128]{1,0:T(1,128)}', space=vmem, size = 0x12000, scoped, tag = 'internal scratch']
  %s0 = inlined_call_operand.vmem [shape: f32[2,8,2,8,64], index: 0, kind: input, shape index: {}]
  %s1 = inlined_call_operand.vmem [shape: f32[32,8], index: 1, kind: input, shape index: {}]
  %s2 = inlined_call_operand.vmem [shape: f32[8,32], index: 2, kind: input, shape index: {}]
  %s3 = inlined_call_operand.vmem [shape: f32[288,32], index: 3, kind: input, shape index: {}]
  %s4 = inlined_call_operand.vmem [shape: f32[4,128,32], index: 4, kind: input, shape index: {}]
  %s5 = inlined_call_operand.vmem [shape: f32[1,32], index: 5, kind: input, shape index: {}]
  %s6 = inlined_call_operand.vmem [shape: f32[1,32], index: 6, kind: input, shape index: {}]
  %s7 = inlined_call_operand.hbm [shape: f32[2,8,2,8,64], index: 7, kind: output, shape index: {}]
  %s8 = sld [smem:[#allocation0]]
  $region61: #{tpu_custom_call.1} parent=0
    _
  %s10 = ssub.s32 1, %s8
  %s11 = scalar_select 0, %s10, %s8
  $region1: #{tpu_custom_call.1} parent=0
    #allocation2 [shape = 'u8[131072]{0}', space=vmem, size = 0x20000, scoped, tag = 'output window, operand 0']
    #allocation3 [shape = 's32[2]{0}', space=sflag, size = 0x8, scoped, tag = 'scoped memory for tpu_custom_call.1']
    %12 = vsyncpa [#allocation3], 0
    %s13 = scalar_lea.sflag [#allocation3], 1
    %14 = vsyncpa %s13, 0
    loop: start=0, step=1, limit=4
    $region2: #{tpu_custom_call.1} parent=1 // loop_pre_header
      _
    $region3: #{tpu_custom_call.1} parent=1 // loop_header
      %s16 = sphi 0, %s20
      %p17 = scmp.ge.s32.totalorder %s16, 4
      %s26 = sphi 0, %s28
      %s29 = sphi 0, %s26
      %s30 = sphi 0, %s29
      %s46 = sphi 0, %s30
      %s50 = sphi 0, %s50
      %s52 = sphi 0, %s50
      %s53 = sphi 0, %s52
      %s67 = sphi 0, %s53
      %s71 = sphi 0, %s71
      %s73 = sphi 0, %s71
      %s74 = sphi 0, %s73
      %s88 = sphi 0, %s74
      %s92 = sphi 0, %s92
      %s94 = sphi 0, %s92
      %s95 = sphi 0, %s94
      %s109 = sphi 0, %s95
      %s113 = sphi 0, %s113
      %s115 = sphi 0, %s113
      %s116 = sphi 0, %s115
      %s130 = sphi 0, %s116
      %s134 = sphi 0, %s134
      %s136 = sphi 0, %s134
      %s137 = sphi 0, %s136
      %s151 = sphi 0, %s137
      %s155 = sphi 0, %s155
      %s157 = sphi 0, %s155
      %s158 = sphi 0, %s157
      %s172 = sphi 0, %s158
      %s178 = sphi 0, %s180
      %s181 = sphi 0, %s178
      %s182 = sphi 0, %s181
      %s198 = sphi 0, %s182
    $region4: #{tpu_custom_call.1} parent=1 // loop_header_branch
      %19 = sbr.rel (%p17) target = $region8
    $region5: #{tpu_custom_call.1} parent=1 // loop_body
      %s21 = ssub.s32 %s16, 1
      %s22 = ssub.s32 %s16, 2
      %s23 = sadd.s32 %s16, 1
      %s24 = ssub.s32 %s16, %s23
      %p25 = scmp.eq.s32.totalorder %s24, 0
      %s27 = sadd.s32 %s26, 1
      %s28 = scalar_select %p25, %s26, %s27
      %p31 = pneg %p25
      %p32 = scmp.eq.s32.totalorder %s16, 1
      %p33 = por %p31, %p32
      %p34 = scmp.ne.s32.totalorder %s26, %s29
      %p35 = scmp.eq.s32.totalorder %s16, 0
      %p36 = por %p34, %p35
      %p37 = scmp.ne.s32.totalorder %s26, %s29
      %p38 = scmp.eq.s32.totalorder %s21, 1
      %p39 = por %p37, %p38
      %p40 = scmp.ne.s32.totalorder %s29, %s30
      %p41 = scmp.eq.s32.totalorder %s21, 0
      %p42 = por %p40, %p41
      %p43 = scmp.ne.s32.totalorder %s29, %s30
      %p44 = scmp.eq.s32.totalorder %s22, 1
      %p45 = por %p43, %p44
      %p47 = scmp.ne.s32.totalorder %s30, %s46
      %p48 = scmp.eq.s32.totalorder %s22, 0
      %p49 = por %p47, %p48
      %s51 = sadd.s32 %s50, 1
      %p54 = scmp.eq.s32.totalorder %s16, 1
      %p55 = scmp.ne.s32.totalorder %s50, %s52
      %p56 = scmp.eq.s32.totalorder %s16, 0
      %p57 = por %p55, %p56
      %p58 = scmp.ne.s32.totalorder %s50, %s52
      %p59 = scmp.eq.s32.totalorder %s21, 1
      %p60 = por %p58, %p59
      %p61 = scmp.ne.s32.totalorder %s52, %s53
      %p62 = scmp.eq.s32.totalorder %s21, 0
      %p63 = por %p61, %p62
      %p64 = scmp.ne.s32.totalorder %s52, %s53
      %p65 = scmp.eq.s32.totalorder %s22, 1
      %p66 = por %p64, %p65
      %p68 = scmp.ne.s32.totalorder %s53, %s67
      %p69 = scmp.eq.s32.totalorder %s22, 0
      %p70 = por %p68, %p69
      %s72 = sadd.s32 %s71, 1
      %p75 = scmp.eq.s32.totalorder %s16, 1
      %p76 = scmp.ne.s32.totalorder %s71, %s73
      %p77 = scmp.eq.s32.totalorder %s16, 0
      %p78 = por %p76, %p77
      %p79 = scmp.ne.s32.totalorder %s71, %s73
      %p80 = scmp.eq.s32.totalorder %s21, 1
      %p81 = por %p79, %p80
      %p82 = scmp.ne.s32.totalorder %s73, %s74
      %p83 = scmp.eq.s32.totalorder %s21, 0
      %p84 = por %p82, %p83
      %p85 = scmp.ne.s32.totalorder %s73, %s74
      %p86 = scmp.eq.s32.totalorder %s22, 1
      %p87 = por %p85, %p86
      %p89 = scmp.ne.s32.totalorder %s74, %s88
      %p90 = scmp.eq.s32.totalorder %s22, 0
      %p91 = por %p89, %p90
      %s93 = sadd.s32 %s92, 1
      %p96 = scmp.eq.s32.totalorder %s16, 1
      %p97 = scmp.ne.s32.totalorder %s92, %s94
      %p98 = scmp.eq.s32.totalorder %s16, 0
      %p99 = por %p97, %p98
      %p100 = scmp.ne.s32.totalorder %s92, %s94
      %p101 = scmp.eq.s32.totalorder %s21, 1
      %p102 = por %p100, %p101
      %p103 = scmp.ne.s32.totalorder %s94, %s95
      %p104 = scmp.eq.s32.totalorder %s21, 0
      %p105 = por %p103, %p104
      %p106 = scmp.ne.s32.totalorder %s94, %s95
      %p107 = scmp.eq.s32.totalorder %s22, 1
      %p108 = por %p106, %p107
      %p110 = scmp.ne.s32.totalorder %s95, %s109
      %p111 = scmp.eq.s32.totalorder %s22, 0
      %p112 = por %p110, %p111
      %s114 = sadd.s32 %s113, 1
      %p117 = scmp.eq.s32.totalorder %s16, 1
      %p118 = scmp.ne.s32.totalorder %s113, %s115
      %p119 = scmp.eq.s32.totalorder %s16, 0
      %p120 = por %p118, %p119
      %p121 = scmp.ne.s32.totalorder %s113, %s115
      %p122 = scmp.eq.s32.totalorder %s21, 1
      %p123 = por %p121, %p122
      %p124 = scmp.ne.s32.totalorder %s115, %s116
      %p125 = scmp.eq.s32.totalorder %s21, 0
      %p126 = por %p124, %p125
      %p127 = scmp.ne.s32.totalorder %s115, %s116
      %p128 = scmp.eq.s32.totalorder %s22, 1
      %p129 = por %p127, %p128
      %p131 = scmp.ne.s32.totalorder %s116, %s130
      %p132 = scmp.eq.s32.totalorder %s22, 0
      %p133 = por %p131, %p132
      %s135 = sadd.s32 %s134, 1
      %p138 = scmp.eq.s32.totalorder %s16, 1
      %p139 = scmp.ne.s32.totalorder %s134, %s136
      %p140 = scmp.eq.s32.totalorder %s16, 0
      %p141 = por %p139, %p140
      %p142 = scmp.ne.s32.totalorder %s134, %s136
      %p143 = scmp.eq.s32.totalorder %s21, 1
      %p144 = por %p142, %p143
      %p145 = scmp.ne.s32.totalorder %s136, %s137
      %p146 = scmp.eq.s32.totalorder %s21, 0
      %p147 = por %p145, %p146
      %p148 = scmp.ne.s32.totalorder %s136, %s137
      %p149 = scmp.eq.s32.totalorder %s22, 1
      %p150 = por %p148, %p149
      %p152 = scmp.ne.s32.totalorder %s137, %s151
      %p153 = scmp.eq.s32.totalorder %s22, 0
      %p154 = por %p152, %p153
      %s156 = sadd.s32 %s155, 1
      %p159 = scmp.eq.s32.totalorder %s16, 1
      %p160 = scmp.ne.s32.totalorder %s155, %s157
      %p161 = scmp.eq.s32.totalorder %s16, 0
      %p162 = por %p160, %p161
      %p163 = scmp.ne.s32.totalorder %s155, %s157
      %p164 = scmp.eq.s32.totalorder %s21, 1
      %p165 = por %p163, %p164
      %p166 = scmp.ne.s32.totalorder %s157, %s158
      %p167 = scmp.eq.s32.totalorder %s21, 0
      %p168 = por %p166, %p167
      %p169 = scmp.ne.s32.totalorder %s157, %s158
      %p170 = scmp.eq.s32.totalorder %s22, 1
      %p171 = por %p169, %p170
      %p173 = scmp.ne.s32.totalorder %s158, %s172
      %p174 = scmp.eq.s32.totalorder %s22, 0
      %p175 = por %p173, %p174
      %s176 = ssub.s32 %s16, %s23
      %p177 = scmp.eq.s32.totalorder %s176, 0
      %s179 = sadd.s32 %s178, 1
      %s180 = scalar_select %p177, %s178, %s179
      %p183 = pneg %p177
      %p184 = scmp.eq.s32.totalorder %s16, 1
      %p185 = por %p183, %p184
      %p186 = scmp.ne.s32.totalorder %s178, %s181
      %p187 = scmp.eq.s32.totalorder %s16, 0
      %p188 = por %p186, %p187
      %p189 = scmp.ne.s32.totalorder %s178, %s181
      %p190 = scmp.eq.s32.totalorder %s21, 1
      %p191 = por %p189, %p190
      %p192 = scmp.ne.s32.totalorder %s181, %s182
      %p193 = scmp.eq.s32.totalorder %s21, 0
      %p194 = por %p192, %p193
      %p195 = scmp.ne.s32.totalorder %s181, %s182
      %p196 = scmp.eq.s32.totalorder %s22, 1
      %p197 = por %p195, %p196
      %p199 = scmp.ne.s32.totalorder %s182, %s198
      %p200 = scmp.eq.s32.totalorder %s22, 0
      %p201 = por %p199, %p200
      %p202 = scmp.le.s32.totalorder 1, %s16
      %p203 = scmp.lt.s32.totalorder %s16, 3
      %p204 = pnand %p202, %p203
      %p205 = pneg %p204
      // Predicated region
      $region9: #{tpu_custom_call.1} parent=5 // pred_check
        _
      $region10: #{tpu_custom_call.1} parent=5 // pred_check_branch
        %207 = sbr.rel (%p204) target = $region12
      $region11: #{tpu_custom_call.1} parent=5 // pred_region
        %s208 = ssub.s32 %s16, 1
        // Predicated region
        $region13: #{tpu_custom_call.1} parent=11 // pred_check
          %p209 = pneg %p63
        $region14: #{tpu_custom_call.1} parent=11 // pred_check_branch
          %211 = sbr.rel (%p209) target = $region16
        $region15: #{tpu_custom_call.1} parent=11 // pred_region
          _
        $region16: #{tpu_custom_call.1} parent=11 // pred_fallthru
          _
        // Predicated region
        $region17: #{tpu_custom_call.1} parent=11 // pred_check
          %p212 = pneg %p84
        $region18: #{tpu_custom_call.1} parent=11 // pred_check_branch
          %214 = sbr.rel (%p212) target = $region20
        $region19: #{tpu_custom_call.1} parent=11 // pred_region
          _
        $region20: #{tpu_custom_call.1} parent=11 // pred_fallthru
          _
        // Predicated region
        $region21: #{tpu_custom_call.1} parent=11 // pred_check
          %p215 = pneg %p105
        $region22: #{tpu_custom_call.1} parent=11 // pred_check_branch
          %217 = sbr.rel (%p215) target = $region24
        $region23: #{tpu_custom_call.1} parent=11 // pred_region
          _
        $region24: #{tpu_custom_call.1} parent=11 // pred_fallthru
          _
        // Predicated region
        $region25: #{tpu_custom_call.1} parent=11 // pred_check
          %p218 = pneg %p126
        $region26: #{tpu_custom_call.1} parent=11 // pred_check_branch
          %220 = sbr.rel (%p218) target = $region28
        $region27: #{tpu_custom_call.1} parent=11 // pred_region
          _
        $region28: #{tpu_custom_call.1} parent=11 // pred_fallthru
          _
        // Predicated region
        $region29: #{tpu_custom_call.1} parent=11 // pred_check
          %p221 = pneg %p147
        $region30: #{tpu_custom_call.1} parent=11 // pred_check_branch
          %223 = sbr.rel (%p221) target = $region32
        $region31: #{tpu_custom_call.1} parent=11 // pred_region
          _
        $region32: #{tpu_custom_call.1} parent=11 // pred_fallthru
          _
        // Predicated region
        $region33: #{tpu_custom_call.1} parent=11 // pred_check
          %p224 = pneg %p168
        $region34: #{tpu_custom_call.1} parent=11 // pred_check_branch
          %226 = sbr.rel (%p224) target = $region36
        $region35: #{tpu_custom_call.1} parent=11 // pred_region
          _
        $region36: #{tpu_custom_call.1} parent=11 // pred_fallthru
          _
      $region12: #{tpu_custom_call.1} parent=5 // pred_fallthru
        _
      %p227 = scmp.lt.s32.totalorder %s16, 2
      // Predicated region
      $region37: #{tpu_custom_call.1} parent=5 // pred_check
        %p228 = pneg %p227
      $region38: #{tpu_custom_call.1} parent=5 // pred_check_branch
        %230 = sbr.rel (%p228) target = $region40
      $region39: #{tpu_custom_call.1} parent=5 // pred_region
        // Predicated region
        $region41: #{tpu_custom_call.1} parent=39 // pred_check
          %p231 = pneg %p36
        $region42: #{tpu_custom_call.1} parent=39 // pred_check_branch
          %233 = sbr.rel (%p231) target = $region44
        $region43: #{tpu_custom_call.1} parent=39 // pred_region
          %p234 = scmp.lt.s32.totalorder %s16, 1
          %s235 = scalar_select %p234, %s16, 1
          %s236 = smul.addr %s235, 16
          %s237 = smul.addr %s236, 8
          %s238 = scalar_lea.vmem %s0, %s237
        $region44: #{tpu_custom_call.1} parent=39 // pred_fallthru
          _
      $region40: #{tpu_custom_call.1} parent=5 // pred_fallthru
        _
      %p239 = scmp.le.s32.totalorder 1, %s16
      %p240 = scmp.lt.s32.totalorder %s16, 3
      %p241 = pnand %p239, %p240
      %p242 = pneg %p241
      // Predicated region
      $region45: #{tpu_custom_call.1} parent=5 // pred_check
        _
      $region46: #{tpu_custom_call.1} parent=5 // pred_check_branch
        %244 = sbr.rel (%p241) target = $region48
      $region47: #{tpu_custom_call.1} parent=5 // pred_region
        %s245 = ssub.s32 %s16, 1
        %p246 = scmp.lt.s32.totalorder %s21, 1
        %s247 = scalar_select %p246, %s21, 1
        %s248 = smul.addr %s247, 16
        %s249 = smul.addr %s248, 8
        %s250 = scalar_lea.vmem %s0, %s249
        %p251 = pneg %p42
        %p252 = pneg %p39
        %p253 = pneg %p63
        %p254 = pneg %p60
        %p255 = pneg %p84
        %p256 = pneg %p81
        %p257 = pneg %p105
        %p258 = pneg %p102
        %p259 = pneg %p126
        %p260 = pneg %p123
        %p261 = pneg %p147
        %p262 = pneg %p144
        %p263 = pneg %p168
        %p264 = pneg %p165
        %p265 = pneg %p194
        %p266 = pneg %p191
        %s267 = sand.u32 %s181, 1
        %s268 = scalar_lea.sflag [#allocation3], %s267
        %s269 = sand.u32 %s181, 1
        %s270 = smul.addr %s269, 128
        %s271 = scalar_lea.vmem [#allocation2], %s270
        %p272 = scmp.lt.s32.totalorder %s21, 1
        %s273 = scalar_select %p272, %s21, 1
        %s274 = smul.addr %s273, 16
        %s275 = smul.addr %s274, 8
        %s276 = scalar_lea.vmem %s0, %s275
        %v277 = vld [vmem:[%s276] sm:$0xff]
        %v278 = vld [vmem:[%s276 + $0x8] sm:$0xff]
        %v279 = vld [vmem:[%s276 + $0x10] sm:$0xff]
        %v280 = vld [vmem:[%s276 + $0x18] sm:$0xff]
        %v281 = vld [vmem:[%s276 + $0x20] sm:$0xff]
        %v282 = vld [vmem:[%s276 + $0x28] sm:$0xff]
        %v283 = vld [vmem:[%s276 + $0x30] sm:$0xff]
        %v284 = vld [vmem:[%s276 + $0x38] sm:$0xff]
        %v285 = vld [vmem:[%s276 + $0x40] sm:$0xff]
        %v286 = vld [vmem:[%s276 + $0x48] sm:$0xff]
        %v287 = vld [vmem:[%s276 + $0x50] sm:$0xff]
        %v288 = vld [vmem:[%s276 + $0x58] sm:$0xff]
        %v289 = vld [vmem:[%s276 + $0x60] sm:$0xff]
        %v290 = vld [vmem:[%s276 + $0x68] sm:$0xff]
        %v291 = vld [vmem:[%s276 + $0x70] sm:$0xff]
        %v292 = vld [vmem:[%s276 + $0x78] sm:$0xff]
        %v293 = vlaneseq
        %v294 = vshrl.u32 %v293, 7
        %vm295 = vcmp.ge.s32.totalorder %v294, 1
        %vm296 = vcmp.le.s32.totalorder %v294, 6
        %305 = vrot.lane.b32.xlu0 %v278, 96
        %v306 = vpop.permute.xlu0 %305
        %307 = vrot.lane.b32.xlu0 %v280, 96
        %v308 = vpop.permute.xlu0 %307
        %309 = vrot.lane.b32.xlu0 %v282, 96
        %v310 = vpop.permute.xlu0 %309
        %311 = vrot.lane.b32.xlu0 %v284, 96
        %v312 = vpop.permute.xlu0 %311
        %313 = vrot.lane.b32.xlu0 %v286, 96
        %v314 = vpop.permute.xlu0 %313
        %315 = vrot.lane.b32.xlu0 %v288, 96
        %v316 = vpop.permute.xlu0 %315
        %317 = vrot.lane.b32.xlu0 %v290, 96
        %v318 = vpop.permute.xlu0 %317
        %319 = vrot.lane.b32.xlu0 %v292, 96
        %v320 = vpop.permute.xlu0 %319
        %v329 = vrot.slane %v306, 7
        %v330 = vrot.slane %v308, 7
        %v331 = vrot.slane %v310, 7
        %v332 = vrot.slane %v312, 7
        %v333 = vrot.slane %v314, 7
        %v334 = vrot.slane %v316, 7
        %v335 = vrot.slane %v318, 7
        %v336 = vrot.slane %v320, 7
        %vm337 = vcmp.lt.s32.totalorder %v294, 1
        %v338 = vsel %vm337, %v334, %v335
        %v339 = vsel %vm337, %v333, %v334
        %v340 = vsel %vm337, %v332, %v333
        %v341 = vsel %vm337, %v331, %v332
        %v342 = vsel %vm337, %v330, %v331
        %v343 = vsel %vm337, %v329, %v330
        %v344 = vsel %vm337, %v336, %v329
        %v345 = vsel %vm295, 1, 0
        %vm346 = vcmp.eq.s32.totalorder %v345, 1
        %v347 = vsel %vm346, %v344, 0.0
        %v348 = vsel %vm346, %v343, 0.0
        %v349 = vsel %vm346, %v342, 0.0
        %v350 = vsel %vm346, %v341, 0.0
        %v351 = vsel %vm346, %v340, 0.0
        %v352 = vsel %vm346, %v339, 0.0
        %v353 = vsel %vm346, %v338, 0.0
        %362 = vrot.lane.b32.xlu0 %v277, 96
        %v363 = vpop.permute.xlu0 %362
        %364 = vrot.lane.b32.xlu0 %v279, 96
        %v365 = vpop.permute.xlu0 %364
        %366 = vrot.lane.b32.xlu0 %v281, 96
        %v367 = vpop.permute.xlu0 %366
        %368 = vrot.lane.b32.xlu0 %v283, 96
        %v369 = vpop.permute.xlu0 %368
        %370 = vrot.lane.b32.xlu0 %v285, 96
        %v371 = vpop.permute.xlu0 %370
        %372 = vrot.lane.b32.xlu0 %v287, 96
        %v373 = vpop.permute.xlu0 %372
        %374 = vrot.lane.b32.xlu0 %v289, 96
        %v375 = vpop.permute.xlu0 %374
        %376 = vrot.lane.b32.xlu0 %v291, 96
        %v377 = vpop.permute.xlu0 %376
        %v386 = vrot.slane %v363, 7
        %v387 = vrot.slane %v365, 7
        %v388 = vrot.slane %v367, 7
        %v389 = vrot.slane %v369, 7
        %v390 = vrot.slane %v371, 7
        %v391 = vrot.slane %v373, 7
        %v392 = vrot.slane %v375, 7
        %v393 = vrot.slane %v377, 7
        %v394 = vsel %vm337, %v392, %v393
        %v395 = vsel %vm337, %v391, %v392
        %v396 = vsel %vm337, %v390, %v391
        %v397 = vsel %vm337, %v389, %v390
        %v398 = vsel %vm337, %v388, %v389
        %v399 = vsel %vm337, %v387, %v388
        %v400 = vsel %vm337, %v386, %v387
        %v401 = vsel %vm337, %v393, %v386
        %v402 = vsel %vm346, %v401, 0.0
        %v403 = vsel %vm346, %v400, 0.0
        %v404 = vsel %vm346, %v399, 0.0
        %v405 = vsel %vm346, %v398, 0.0
        %v406 = vsel %vm346, %v397, 0.0
        %v407 = vsel %vm346, %v396, 0.0
        %v408 = vsel %vm346, %v395, 0.0
        %v409 = vsel %vm346, %v394, 0.0
        %v410 = vsel %vm337, %v335, %v336
        %v411 = vsel %vm346, %v410, 0.0
        %413 = vrot.lane.b32.xlu0 0.0, 32
        %v414 = vpop.permute.xlu0 %413
        %415 = vrot.lane.b32.xlu0 %v278, 32
        %v416 = vpop.permute.xlu0 %415
        %417 = vrot.lane.b32.xlu0 %v280, 32
        %v418 = vpop.permute.xlu0 %417
        %419 = vrot.lane.b32.xlu0 %v282, 32
        %v420 = vpop.permute.xlu0 %419
        %421 = vrot.lane.b32.xlu0 %v284, 32
        %v422 = vpop.permute.xlu0 %421
        %423 = vrot.lane.b32.xlu0 %v286, 32
        %v424 = vpop.permute.xlu0 %423
        %425 = vrot.lane.b32.xlu0 %v288, 32
        %v426 = vpop.permute.xlu0 %425
        %427 = vrot.lane.b32.xlu0 %v290, 32
        %v428 = vpop.permute.xlu0 %427
        %437 = vrot.lane.b32.xlu0 0.0, 64
        %v438 = vpop.permute.xlu0 %437
        %439 = vrot.lane.b32.xlu0 %v306, 64
        %v440 = vpop.permute.xlu0 %439
        %441 = vrot.lane.b32.xlu0 %v308, 64
        %v442 = vpop.permute.xlu0 %441
        %443 = vrot.lane.b32.xlu0 %v310, 64
        %v444 = vpop.permute.xlu0 %443
        %445 = vrot.lane.b32.xlu0 %v312, 64
        %v446 = vpop.permute.xlu0 %445
        %447 = vrot.lane.b32.xlu0 %v314, 64
        %v448 = vpop.permute.xlu0 %447
        %449 = vrot.lane.b32.xlu0 %v316, 64
        %v450 = vpop.permute.xlu0 %449
        %451 = vrot.lane.b32.xlu0 %v318, 64
        %v452 = vpop.permute.xlu0 %451
        %469 = vrot.lane.b32.xlu0 %v402, 96
        %v470 = vpop.permute.xlu0 %469
        %471 = vrot.lane.b32.xlu0 %v403, 96
        %v472 = vpop.permute.xlu0 %471
        %473 = vrot.lane.b32.xlu0 %v404, 96
        %v474 = vpop.permute.xlu0 %473
        %475 = vrot.lane.b32.xlu0 %v405, 96
        %v476 = vpop.permute.xlu0 %475
        %477 = vrot.lane.b32.xlu0 %v406, 96
        %v478 = vpop.permute.xlu0 %477
        %479 = vrot.lane.b32.xlu0 %v407, 96
        %v480 = vpop.permute.xlu0 %479
        %481 = vrot.lane.b32.xlu0 %v408, 96
        %v482 = vpop.permute.xlu0 %481
        %483 = vrot.lane.b32.xlu0 %v409, 96
        %v484 = vpop.permute.xlu0 %483
        %501 = vrot.lane.b32.xlu0 %v347, 64
        %v502 = vpop.permute.xlu0 %501
        %503 = vrot.lane.b32.xlu0 %v348, 64
        %v504 = vpop.permute.xlu0 %503
        %505 = vrot.lane.b32.xlu0 %v349, 64
        %v506 = vpop.permute.xlu0 %505
        %507 = vrot.lane.b32.xlu0 %v350, 64
        %v508 = vpop.permute.xlu0 %507
        %509 = vrot.lane.b32.xlu0 %v351, 64
        %v510 = vpop.permute.xlu0 %509
        %511 = vrot.lane.b32.xlu0 %v352, 64
        %v512 = vpop.permute.xlu0 %511
        %513 = vrot.lane.b32.xlu0 %v353, 64
        %v514 = vpop.permute.xlu0 %513
        %515 = vrot.lane.b32.xlu0 %v411, 64
        %v516 = vpop.permute.xlu0 %515
        %vm525 = vcmask 261120
        %v526 = vsel %vm525, 0.0, %v414
        %v527 = vsel %vm525, %v347, %v416
        %v528 = vsel %vm525, %v348, %v418
        %v529 = vsel %vm525, %v349, %v420
        %v530 = vsel %vm525, %v350, %v422
        %v531 = vsel %vm525, %v351, %v424
        %v532 = vsel %vm525, %v352, %v426
        %v533 = vsel %vm525, %v353, %v428
        %vm534 = vcmask 523264
        %v535 = vsel %vm534, %v526, %v438
        %v536 = vsel %vm534, %v527, %v440
        %v537 = vsel %vm534, %v528, %v442
        %v538 = vsel %vm534, %v529, %v444
        %v539 = vsel %vm534, %v530, %v446
        %v540 = vsel %vm534, %v531, %v448
        %v541 = vsel %vm534, %v532, %v450
        %v542 = vsel %vm534, %v533, %v452
        %vm543 = vcmask 785408
        %v544 = vsel %vm543, %v535, %v470
        %v545 = vsel %vm543, %v536, %v472
        %v546 = vsel %vm543, %v537, %v474
        %v547 = vsel %vm543, %v538, %v476
        %v548 = vsel %vm543, %v539, %v478
        %v549 = vsel %vm543, %v540, %v480
        %v550 = vsel %vm543, %v541, %v482
        %v551 = vsel %vm543, %v542, %v484
        %v552 = vsel %vm534, %v277, %v502
        %v553 = vsel %vm534, %v279, %v504
        %v554 = vsel %vm534, %v281, %v506
        %v555 = vsel %vm534, %v283, %v508
        %v556 = vsel %vm534, %v285, %v510
        %v557 = vsel %vm534, %v287, %v512
        %v558 = vsel %vm534, %v289, %v514
        %v559 = vsel %vm534, %v291, %v516
        %v560 = vsel %vm543, %v552, %v306
        %v561 = vsel %vm543, %v553, %v308
        %v562 = vsel %vm543, %v554, %v310
        %v563 = vsel %vm543, %v555, %v312
        %v564 = vsel %vm543, %v556, %v314
        %v565 = vsel %vm543, %v557, %v316
        %v566 = vsel %vm543, %v558, %v318
        %v567 = vsel %vm543, %v559, %v320
        %v568 = vadd.f32 %v277, %v278
        %v569 = vadd.f32 %v279, %v280
        %v570 = vadd.f32 %v281, %v282
        %v571 = vadd.f32 %v283, %v284
        %v572 = vadd.f32 %v285, %v286
        %v573 = vadd.f32 %v287, %v288
        %v574 = vadd.f32 %v289, %v290
        %v575 = vadd.f32 %v291, %v292
        %v576 = vsel %vm534, %v568, 0.0
        %v577 = vsel %vm534, %v569, 0.0
        %v578 = vadd.f32 %v576, %v577
        %v579 = vsel %vm534, %v570, 0.0
        %v580 = vadd.f32 %v578, %v579
        %v581 = vsel %vm534, %v571, 0.0
        %v582 = vadd.f32 %v580, %v581
        %v583 = vsel %vm534, %v572, 0.0
        %v584 = vadd.f32 %v582, %v583
        %v585 = vsel %vm534, %v573, 0.0
        %v586 = vadd.f32 %v584, %v585
        %v587 = vsel %vm534, %v574, 0.0
        %v588 = vadd.f32 %v586, %v587
        %v589 = vsel %vm534, %v575, 0.0
        %v590 = vadd.f32 %v588, %v589
        %v591 = vrot.slane %v590, 4
        %v592 = vadd.f32 %v590, %v591
        %v593 = vrot.slane %v592, 2
        %v594 = vadd.f32 %v592, %v593
        %v595 = vrot.slane %v594, 1
        %v596 = vadd.f32 %v594, %v595
        %598 = vrot.lane.b32.xlu0 %v596, 96
        %v599 = vpop.permute.xlu0 %598
        %v601 = vadd.f32 %v596, %v599
        %v602 = vmul.f32 %v601, 0.00390625
        %v603 = vld [vmem:[%s1] sm:$0xff]
        %v604 = vld [vmem:[%s1 + $0x8] sm:$0xff]
        %v605 = vld [vmem:[%s1 + $0x10] sm:$0xff]
        %v606 = vld [vmem:[%s1 + $0x18] sm:$0xff]
        %v608 = vsel %vm525, %v602, 0
        %610 = vmatprep.subr.mxu0 0.0
        %611 = vmatpush1.msra.mxu0 %v603
        %612 = vmatprep.subr.mxu0 0.0
        %613 = vmatpush1.msra.mxu0 %v604
        %614 = vmatprep.subr.mxu0 0.0
        %615 = vmatpush1.msra.mxu0 %v605
        %616 = vmatprep.subr.mxu0 0.0
        %617 = vmatpush1.msra.mxu0 %v606
        %618 = vmatprep.subr.mxu0 0.0
        %619 = vmatpush1.msra.mxu0 0.0
        %620 = vmatprep.subr.mxu0 0.0
        %621 = vmatpush1.msra.mxu0 0.0
        %622 = vmatprep.subr.mxu0 0.0
        %623 = vmatpush1.msra.mxu0 0.0
        %624 = vmatprep.subr.mxu0 0.0
        %625 = vmatpush1.msra.mxu0 0.0
        %626 = vmatprep.subr.mxu0 0.0
        %627 = vmatpush1.msra.mxu0 0.0
        %628 = vmatprep.subr.mxu0 0.0
        %629 = vmatpush1.msra.mxu0 0.0
        %630 = vmatprep.subr.mxu0 0.0
        %631 = vmatpush1.msra.mxu0 0.0
        %632 = vmatprep.subr.mxu0 0.0
        %633 = vmatpush1.msra.mxu0 0.0
        %634 = vmatprep.subr.mxu0 0.0
        %635 = vmatpush1.msra.mxu0 0.0
        %636 = vmatprep.subr.mxu0 0.0
        %637 = vmatpush1.msra.mxu0 0.0
        %638 = vmatprep.subr.mxu0 0.0
        %639 = vmatpush1.msra.mxu0 0.0
        %640 = vmatprep.subr.mxu0 0.0
        %641 = vmatpush1.msra.mxu0 0.0
        %642 = vmatprep.subr.mxu0 0.0
        %643 = vmatpush1.msra.mxu0 0.0
        %644 = vmatprep.subr.mxu0 0.0
        %645 = vmatpush1.msra.mxu0 0.0
        %646 = vmatprep.subr.mxu0 0.0
        %647 = vmatpush1.msra.mxu0 0.0
        %648 = vmatprep.subr.mxu0 0.0
        %649 = vmatpush1.msra.mxu0 0.0
        %650 = vmatprep.subr.mxu0 0.0
        %651 = vmatpush1.msra.mxu0 0.0
        %652 = vmatprep.subr.mxu0 0.0
        %653 = vmatpush1.msra.mxu0 0.0
        %654 = vmatprep.subr.mxu0 0.0
        %655 = vmatpush1.msra.mxu0 0.0
        %656 = vmatprep.subr.mxu0 0.0
        %657 = vmatpush1.msra.mxu0 0.0
        %658 = vmatprep.subr.mxu0 0.0
        %659 = vmatpush1.msra.mxu0 0.0
        %660 = vmatprep.subr.mxu0 0.0
        %661 = vmatpush1.msra.mxu0 0.0
        %662 = vmatprep.subr.mxu0 0.0
        %663 = vmatpush1.msra.mxu0 0.0
        %664 = vmatprep.subr.mxu0 0.0
        %665 = vmatpush1.msra.mxu0 0.0
        %666 = vmatprep.subr.mxu0 0.0
        %667 = vmatpush1.msra.mxu0 0.0
        %668 = vmatprep.subr.mxu0 0.0
        %669 = vmatpush1.msra.mxu0 0.0
        %670 = vmatprep.subr.mxu0 0.0
        %671 = vmatpush1.msra.mxu0 0.0
        %672 = vmatprep.subr.mxu0 0.0
        %673 = vmatpush1.msra.mxu0 0.0
        %674 = vmatprep.mubr.f32.mxu0 0.0
        %675 = vmatmul.mubr.f32.gmra.mrb[0].mxu0 %v608
        %v676 = vpop.f32.mrb[0].mxu0
        %v677 = vadd.f32 0.0, %v676
        %v678 = vpop.f32.mrb[0].mxu0
        %679 = vdwg.mxu0
        %v680 = vmax.f32 %v677, 0.0
        %v681 = vld [vmem:[%s2] sm:$0xff]
        %vm682 = vcmask 64512
        %v684 = vsel %vm682, %v680, 0
        %686 = vmatprep.subr.mxu0 0.0
        %687 = vmatpush1.msra.mxu0 %v681
        %688 = vmatprep.subr.mxu0 0.0
        %689 = vmatpush1.msra.mxu0 0.0
        %690 = vmatprep.subr.mxu0 0.0
        %691 = vmatpush1.msra.mxu0 0.0
        %692 = vmatprep.subr.mxu0 0.0
        %693 = vmatpush1.msra.mxu0 0.0
        %694 = vmatprep.subr.mxu0 0.0
        %695 = vmatpush1.msra.mxu0 0.0
        %696 = vmatprep.subr.mxu0 0.0
        %697 = vmatpush1.msra.mxu0 0.0
        %698 = vmatprep.subr.mxu0 0.0
        %699 = vmatpush1.msra.mxu0 0.0
        %700 = vmatprep.subr.mxu0 0.0
        %701 = vmatpush1.msra.mxu0 0.0
        %702 = vmatprep.subr.mxu0 0.0
        %703 = vmatpush1.msra.mxu0 0.0
        %704 = vmatprep.subr.mxu0 0.0
        %705 = vmatpush1.msra.mxu0 0.0
        %706 = vmatprep.subr.mxu0 0.0
        %707 = vmatpush1.msra.mxu0 0.0
        %708 = vmatprep.subr.mxu0 0.0
        %709 = vmatpush1.msra.mxu0 0.0
        %710 = vmatprep.subr.mxu0 0.0
        %711 = vmatpush1.msra.mxu0 0.0
        %712 = vmatprep.subr.mxu0 0.0
        %713 = vmatpush1.msra.mxu0 0.0
        %714 = vmatprep.subr.mxu0 0.0
        %715 = vmatpush1.msra.mxu0 0.0
        %716 = vmatprep.subr.mxu0 0.0
        %717 = vmatpush1.msra.mxu0 0.0
        %718 = vmatprep.subr.mxu0 0.0
        %719 = vmatpush1.msra.mxu0 0.0
        %720 = vmatprep.subr.mxu0 0.0
        %721 = vmatpush1.msra.mxu0 0.0
        %722 = vmatprep.subr.mxu0 0.0
        %723 = vmatpush1.msra.mxu0 0.0
        %724 = vmatprep.subr.mxu0 0.0
        %725 = vmatpush1.msra.mxu0 0.0
        %726 = vmatprep.subr.mxu0 0.0
        %727 = vmatpush1.msra.mxu0 0.0
        %728 = vmatprep.subr.mxu0 0.0
        %729 = vmatpush1.msra.mxu0 0.0
        %730 = vmatprep.subr.mxu0 0.0
        %731 = vmatpush1.msra.mxu0 0.0
        %732 = vmatprep.subr.mxu0 0.0
        %733 = vmatpush1.msra.mxu0 0.0
        %734 = vmatprep.subr.mxu0 0.0
        %735 = vmatpush1.msra.mxu0 0.0
        %736 = vmatprep.subr.mxu0 0.0
        %737 = vmatpush1.msra.mxu0 0.0
        %738 = vmatprep.subr.mxu0 0.0
        %739 = vmatpush1.msra.mxu0 0.0
        %740 = vmatprep.subr.mxu0 0.0
        %741 = vmatpush1.msra.mxu0 0.0
        %742 = vmatprep.subr.mxu0 0.0
        %743 = vmatpush1.msra.mxu0 0.0
        %744 = vmatprep.subr.mxu0 0.0
        %745 = vmatpush1.msra.mxu0 0.0
        %746 = vmatprep.subr.mxu0 0.0
        %747 = vmatpush1.msra.mxu0 0.0
        %748 = vmatprep.subr.mxu0 0.0
        %749 = vmatpush1.msra.mxu0 0.0
        %750 = vmatprep.mubr.f32.mxu0 0.0
        %751 = vmatmul.mubr.f32.gmra.mrb[0].mxu0 %v684
        %v752 = vpop.f32.mrb[0].mxu0
        %v753 = vadd.f32 0.0, %v752
        %v754 = vpop.f32.mrb[0].mxu0
        %755 = vdwg.mxu0
        %v756 = vsub.f32 0.0, %v753
        %v757 = vmul.f32 %v756, 1.442695
        %v758 = vpow.pop %v757
        %v759 = vadd.f32 %v758, 1.0
        %v760 = vrcp.pop %v759
        %v761 = vmul.f32 1.0, %v760
        %763 = vrot.lane.b32.xlu0 %v761, 32
        %v764 = vpop.permute.xlu0 %763
        %766 = vrot.lane.b32.xlu0 %v761, 64
        %v767 = vpop.permute.xlu0 %766
        %769 = vrot.lane.b32.xlu0 %v761, 96
        %v770 = vpop.permute.xlu0 %769
        %v772 = vsel %vm525, %v761, %v764
        %v773 = vsel %vm534, %v772, %v767
        %v774 = vsel %vm543, %v773, %v770
        %v775 = vlaneseq
        %v776 = vshrl.u32 %v775, 7
        %v777 = vsub.s32 0, %v776
        %v778 = vrot.slane %v774, %v777
        %v779 = vlaneseq
        %v780 = vshrl.u32 %v779, 7
        %v781 = vsub.s32 0, %v780
        %v782 = vrot.slane %v761, %v781
        %v783 = vmul.f32 %v544, %v778
        %v784 = vmul.f32 %v560, %v778
        %v785 = vmul.f32 %v306, %v782
        %v786 = vmul.f32 %v545, %v778
        %v787 = vmul.f32 %v561, %v778
        %v788 = vmul.f32 %v308, %v782
        %v789 = vmul.f32 %v546, %v778
        %v790 = vmul.f32 %v562, %v778
        %v791 = vmul.f32 %v310, %v782
        %v792 = vmul.f32 %v547, %v778
        %v793 = vmul.f32 %v563, %v778
        %v794 = vmul.f32 %v312, %v782
        %v795 = vmul.f32 %v548, %v778
        %v796 = vmul.f32 %v564, %v778
        %v797 = vmul.f32 %v314, %v782
        %v798 = vmul.f32 %v549, %v778
        %v799 = vmul.f32 %v565, %v778
        %v800 = vmul.f32 %v316, %v782
        %v801 = vmul.f32 %v550, %v778
        %v802 = vmul.f32 %v566, %v778
        %v803 = vmul.f32 %v318, %v782
        %v804 = vmul.f32 %v551, %v778
        %v805 = vmul.f32 %v567, %v778
        %v806 = vmul.f32 %v320, %v782
        %v807 = vld [vmem:[%s3] sm:$0xff]
        %v808 = vld [vmem:[%s3 + $0x8] sm:$0xff]
        %v809 = vld [vmem:[%s3 + $0x10] sm:$0xff]
        %v810 = vld [vmem:[%s3 + $0x18] sm:$0xff]
        %v811 = vld [vmem:[%s3 + $0x20] sm:$0xff]
        %v812 = vld [vmem:[%s3 + $0x28] sm:$0xff]
        %v813 = vld [vmem:[%s3 + $0x30] sm:$0xff]
        %v814 = vld [vmem:[%s3 + $0x38] sm:$0xff]
        %v815 = vld [vmem:[%s3 + $0x40] sm:$0xff]
        %v816 = vld [vmem:[%s3 + $0x48] sm:$0xff]
        %v817 = vld [vmem:[%s3 + $0x50] sm:$0xff]
        %v818 = vld [vmem:[%s3 + $0x58] sm:$0xff]
        %v819 = vld [vmem:[%s3 + $0x60] sm:$0xff]
        %v820 = vld [vmem:[%s3 + $0x68] sm:$0xff]
        %v821 = vld [vmem:[%s3 + $0x70] sm:$0xff]
        %v822 = vld [vmem:[%s3 + $0x78] sm:$0xff]
        %v823 = vld [vmem:[%s3 + $0x80] sm:$0xff]
        %v824 = vld [vmem:[%s3 + $0x88] sm:$0xff]
        %v825 = vld [vmem:[%s3 + $0x90] sm:$0xff]
        %v826 = vld [vmem:[%s3 + $0x98] sm:$0xff]
        %v827 = vld [vmem:[%s3 + $0xa0] sm:$0xff]
        %v828 = vld [vmem:[%s3 + $0xa8] sm:$0xff]
        %v829 = vld [vmem:[%s3 + $0xb0] sm:$0xff]
        %v830 = vld [vmem:[%s3 + $0xb8] sm:$0xff]
        %v831 = vld [vmem:[%s3 + $0xc0] sm:$0xff]
        %v832 = vld [vmem:[%s3 + $0xc8] sm:$0xff]
        %v833 = vld [vmem:[%s3 + $0xd0] sm:$0xff]
        %v834 = vld [vmem:[%s3 + $0xd8] sm:$0xff]
        %v835 = vld [vmem:[%s3 + $0xe0] sm:$0xff]
        %v836 = vld [vmem:[%s3 + $0xe8] sm:$0xff]
        %v837 = vld [vmem:[%s3 + $0xf0] sm:$0xff]
        %v838 = vld [vmem:[%s3 + $0xf8] sm:$0xff]
        %v839 = vld [vmem:[%s3 + $0x100] sm:$0xff]
        %v840 = vld [vmem:[%s3 + $0x108] sm:$0xff]
        %v841 = vld [vmem:[%s3 + $0x110] sm:$0xff]
        %v842 = vld [vmem:[%s3 + $0x118] sm:$0xff]
        %v844 = vsel %vm525, %v785, 0
        %v847 = vsel %vm525, %v788, 0
        %v850 = vsel %vm525, %v791, 0
        %v853 = vsel %vm525, %v794, 0
        %v856 = vsel %vm525, %v797, 0
        %v859 = vsel %vm525, %v800, 0
        %v862 = vsel %vm525, %v803, 0
        %v865 = vsel %vm525, %v806, 0
        %867 = vmatprep.subr.mxu0 0.0
        %868 = vmatpush1.msra.mxu0 %v807
        %869 = vmatprep.subr.mxu0 0.0
        %870 = vmatpush1.msra.mxu0 %v808
        %871 = vmatprep.subr.mxu0 0.0
        %872 = vmatpush1.msra.mxu0 %v809
        %873 = vmatprep.subr.mxu0 0.0
        %874 = vmatpush1.msra.mxu0 %v810
        %875 = vmatprep.subr.mxu0 0.0
        %876 = vmatpush1.msra.mxu0 %v811
        %877 = vmatprep.subr.mxu0 0.0
        %878 = vmatpush1.msra.mxu0 %v812
        %879 = vmatprep.subr.mxu0 0.0
        %880 = vmatpush1.msra.mxu0 %v813
        %881 = vmatprep.subr.mxu0 0.0
        %882 = vmatpush1.msra.mxu0 %v814
        %883 = vmatprep.subr.mxu0 0.0
        %884 = vmatpush1.msra.mxu0 %v815
        %885 = vmatprep.subr.mxu0 0.0
        %886 = vmatpush1.msra.mxu0 %v816
        %887 = vmatprep.subr.mxu0 0.0
        %888 = vmatpush1.msra.mxu0 %v817
        %889 = vmatprep.subr.mxu0 0.0
        %890 = vmatpush1.msra.mxu0 %v818
        %891 = vmatprep.subr.mxu0 0.0
        %892 = vmatpush1.msra.mxu0 %v819
        %893 = vmatprep.subr.mxu0 0.0
        %894 = vmatpush1.msra.mxu0 %v820
        %895 = vmatprep.subr.mxu0 0.0
        %896 = vmatpush1.msra.mxu0 %v821
        %897 = vmatprep.subr.mxu0 0.0
        %898 = vmatpush1.msra.mxu0 %v822
        %899 = vmatprep.subr.mxu0 0.0
        %900 = vmatpush1.msra.mxu0 %v823
        %901 = vmatprep.subr.mxu0 0.0
        %902 = vmatpush1.msra.mxu0 %v824
        %903 = vmatprep.subr.mxu0 0.0
        %904 = vmatpush1.msra.mxu0 %v825
        %905 = vmatprep.subr.mxu0 0.0
        %906 = vmatpush1.msra.mxu0 %v826
        %907 = vmatprep.subr.mxu0 0.0
        %908 = vmatpush1.msra.mxu0 %v827
        %909 = vmatprep.subr.mxu0 0.0
        %910 = vmatpush1.msra.mxu0 %v828
        %911 = vmatprep.subr.mxu0 0.0
        %912 = vmatpush1.msra.mxu0 %v829
        %913 = vmatprep.subr.mxu0 0.0
        %914 = vmatpush1.msra.mxu0 %v830
        %915 = vmatprep.subr.mxu0 0.0
        %916 = vmatpush1.msra.mxu0 %v831
        %917 = vmatprep.subr.mxu0 0.0
        %918 = vmatpush1.msra.mxu0 %v832
        %919 = vmatprep.subr.mxu0 0.0
        %920 = vmatpush1.msra.mxu0 %v833
        %921 = vmatprep.subr.mxu0 0.0
        %922 = vmatpush1.msra.mxu0 %v834
        %923 = vmatprep.subr.mxu0 0.0
        %924 = vmatpush1.msra.mxu0 %v835
        %925 = vmatprep.subr.mxu0 0.0
        %926 = vmatpush1.msra.mxu0 %v836
        %927 = vmatprep.subr.mxu0 0.0
        %928 = vmatpush1.msra.mxu0 %v837
        %929 = vmatprep.subr.mxu0 0.0
        %930 = vmatpush1.msra.mxu0 %v838
        %931 = vmatprep.mubr.f32.mxu0 %v784
        %932 = vmatmul.mubr.f32.gmra.mrb[0].mxu0 %v783
        %v933 = vpop.f32.mrb[0].mxu0
        %v934 = vadd.f32 0.0, %v933
        %v935 = vpop.f32.mrb[0].mxu0
        %936 = vmatprep.mubr.f32.mxu0 %v787
        %937 = vmatmul.mubr.f32.gmra.mrb[0].mxu0 %v786
        %v938 = vpop.f32.mrb[0].mxu0
        %v939 = vadd.f32 0.0, %v938
        %v940 = vpop.f32.mrb[0].mxu0
        %941 = vmatprep.mubr.f32.mxu0 %v790
        %942 = vmatmul.mubr.f32.gmra.mrb[0].mxu0 %v789
        %v943 = vpop.f32.mrb[0].mxu0
        %v944 = vadd.f32 0.0, %v943
        %v945 = vpop.f32.mrb[0].mxu0
        %946 = vmatprep.mubr.f32.mxu0 %v793
        %947 = vmatmul.mubr.f32.gmra.mrb[0].mxu0 %v792
        %v948 = vpop.f32.mrb[0].mxu0
        %v949 = vadd.f32 0.0, %v948
        %v950 = vpop.f32.mrb[0].mxu0
        %951 = vmatprep.mubr.f32.mxu0 %v796
        %952 = vmatmul.mubr.f32.gmra.mrb[0].mxu0 %v795
        %v953 = vpop.f32.mrb[0].mxu0
        %v954 = vadd.f32 0.0, %v953
        %v955 = vpop.f32.mrb[0].mxu0
        %956 = vmatprep.mubr.f32.mxu0 %v799
        %957 = vmatmul.mubr.f32.gmra.mrb[0].mxu0 %v798
        %v958 = vpop.f32.mrb[0].mxu0
        %v959 = vadd.f32 0.0, %v958
        %v960 = vpop.f32.mrb[0].mxu0
        %961 = vmatprep.mubr.f32.mxu0 %v802
        %962 = vmatmul.mubr.f32.gmra.mrb[0].mxu0 %v801
        %v963 = vpop.f32.mrb[0].mxu0
        %v964 = vadd.f32 0.0, %v963
        %v965 = vpop.f32.mrb[0].mxu0
        %966 = vmatprep.mubr.f32.mxu0 %v805
        %967 = vmatmul.mubr.f32.gmra.mrb[0].mxu0 %v804
        %v968 = vpop.f32.mrb[0].mxu0
        %v969 = vadd.f32 0.0, %v968
        %v970 = vpop.f32.mrb[0].mxu0
        %971 = vdwg.mxu0
        %972 = vmatprep.subr.mxu0 0.0
        %973 = vmatpush1.msra.mxu0 %v839
        %974 = vmatprep.subr.mxu0 0.0
        %975 = vmatpush1.msra.mxu0 %v840
        %976 = vmatprep.subr.mxu0 0.0
        %977 = vmatpush1.msra.mxu0 %v841
        %978 = vmatprep.subr.mxu0 0.0
        %979 = vmatpush1.msra.mxu0 %v842
        %980 = vmatprep.subr.mxu0 0.0
        %981 = vmatpush1.msra.mxu0 0.0
        %982 = vmatprep.subr.mxu0 0.0
        %983 = vmatpush1.msra.mxu0 0.0
        %984 = vmatprep.subr.mxu0 0.0
        %985 = vmatpush1.msra.mxu0 0.0
        %986 = vmatprep.subr.mxu0 0.0
        %987 = vmatpush1.msra.mxu0 0.0
        %988 = vmatprep.subr.mxu0 0.0
        %989 = vmatpush1.msra.mxu0 0.0
        %990 = vmatprep.subr.mxu0 0.0
        %991 = vmatpush1.msra.mxu0 0.0
        %992 = vmatprep.subr.mxu0 0.0
        %993 = vmatpush1.msra.mxu0 0.0
        %994 = vmatprep.subr.mxu0 0.0
        %995 = vmatpush1.msra.mxu0 0.0
        %996 = vmatprep.subr.mxu0 0.0
        %997 = vmatpush1.msra.mxu0 0.0
        %998 = vmatprep.subr.mxu0 0.0
        %999 = vmatpush1.msra.mxu0 0.0
        %1000 = vmatprep.subr.mxu0 0.0
        %1001 = vmatpush1.msra.mxu0 0.0
        %1002 = vmatprep.subr.mxu0 0.0
        %1003 = vmatpush1.msra.mxu0 0.0
        %1004 = vmatprep.subr.mxu0 0.0
        %1005 = vmatpush1.msra.mxu0 0.0
        %1006 = vmatprep.subr.mxu0 0.0
        %1007 = vmatpush1.msra.mxu0 0.0
        %1008 = vmatprep.subr.mxu0 0.0
        %1009 = vmatpush1.msra.mxu0 0.0
        %1010 = vmatprep.subr.mxu0 0.0
        %1011 = vmatpush1.msra.mxu0 0.0
        %1012 = vmatprep.subr.mxu0 0.0
        %1013 = vmatpush1.msra.mxu0 0.0
        %1014 = vmatprep.subr.mxu0 0.0
        %1015 = vmatpush1.msra.mxu0 0.0
        %1016 = vmatprep.subr.mxu0 0.0
        %1017 = vmatpush1.msra.mxu0 0.0
        %1018 = vmatprep.subr.mxu0 0.0
        %1019 = vmatpush1.msra.mxu0 0.0
        %1020 = vmatprep.subr.mxu0 0.0
        %1021 = vmatpush1.msra.mxu0 0.0
        %1022 = vmatprep.subr.mxu0 0.0
        %1023 = vmatpush1.msra.mxu0 0.0
        %1024 = vmatprep.subr.mxu0 0.0
        %1025 = vmatpush1.msra.mxu0 0.0
        %1026 = vmatprep.subr.mxu0 0.0
        %1027 = vmatpush1.msra.mxu0 0.0
        %1028 = vmatprep.subr.mxu0 0.0
        %1029 = vmatpush1.msra.mxu0 0.0
        %1030 = vmatprep.subr.mxu0 0.0
        %1031 = vmatpush1.msra.mxu0 0.0
        %1032 = vmatprep.subr.mxu0 0.0
        %1033 = vmatpush1.msra.mxu0 0.0
        %1034 = vmatprep.subr.mxu0 0.0
        %1035 = vmatpush1.msra.mxu0 0.0
        %1036 = vmatprep.mubr.f32.mxu0 0.0
        %1037 = vmatmul.mubr.f32.gmra.mrb[0].mxu0 %v844
        %v1038 = vpop.f32.mrb[0].mxu0
        %v1039 = vadd.f32 %v934, %v1038
        %v1040 = vpop.f32.mrb[0].mxu0
        %1041 = vmatprep.mubr.f32.mxu0 0.0
        %1042 = vmatmul.mubr.f32.gmra.mrb[0].mxu0 %v847
        %v1043 = vpop.f32.mrb[0].mxu0
        %v1044 = vadd.f32 %v939, %v1043
        %v1045 = vpop.f32.mrb[0].mxu0
        %1046 = vmatprep.mubr.f32.mxu0 0.0
        %1047 = vmatmul.mubr.f32.gmra.mrb[0].mxu0 %v850
        %v1048 = vpop.f32.mrb[0].mxu0
        %v1049 = vadd.f32 %v944, %v1048
        %v1050 = vpop.f32.mrb[0].mxu0
        %1051 = vmatprep.mubr.f32.mxu0 0.0
        %1052 = vmatmul.mubr.f32.gmra.mrb[0].mxu0 %v853
        %v1053 = vpop.f32.mrb[0].mxu0
        %v1054 = vadd.f32 %v949, %v1053
        %v1055 = vpop.f32.mrb[0].mxu0
        %1056 = vmatprep.mubr.f32.mxu0 0.0
        %1057 = vmatmul.mubr.f32.gmra.mrb[0].mxu0 %v856
        %v1058 = vpop.f32.mrb[0].mxu0
        %v1059 = vadd.f32 %v954, %v1058
        %v1060 = vpop.f32.mrb[0].mxu0
        %1061 = vmatprep.mubr.f32.mxu0 0.0
        %1062 = vmatmul.mubr.f32.gmra.mrb[0].mxu0 %v859
        %v1063 = vpop.f32.mrb[0].mxu0
        %v1064 = vadd.f32 %v959, %v1063
        %v1065 = vpop.f32.mrb[0].mxu0
        %1066 = vmatprep.mubr.f32.mxu0 0.0
        %1067 = vmatmul.mubr.f32.gmra.mrb[0].mxu0 %v862
        %v1068 = vpop.f32.mrb[0].mxu0
        %v1069 = vadd.f32 %v964, %v1068
        %v1070 = vpop.f32.mrb[0].mxu0
        %1071 = vmatprep.mubr.f32.mxu0 0.0
        %1072 = vmatmul.mubr.f32.gmra.mrb[0].mxu0 %v865
        %v1073 = vpop.f32.mrb[0].mxu0
        %v1074 = vadd.f32 %v969, %v1073
        %v1075 = vpop.f32.mrb[0].mxu0
        %1076 = vdwg.mxu0
        %v1077 = vmax.f32 %v1039, 0.0
        %v1078 = vmax.f32 %v1044, 0.0
        %v1079 = vmax.f32 %v1049, 0.0
        %v1080 = vmax.f32 %v1054, 0.0
        %v1081 = vmax.f32 %v1059, 0.0
        %v1082 = vmax.f32 %v1064, 0.0
        %v1083 = vmax.f32 %v1069, 0.0
        %v1084 = vmax.f32 %v1074, 0.0
        %v1085 = vrot.slane %v1077, 7
        %v1086 = vrot.slane %v1078, 7
        %v1087 = vrot.slane %v1079, 7
        %v1088 = vrot.slane %v1080, 7
        %v1089 = vrot.slane %v1081, 7
        %v1090 = vrot.slane %v1082, 7
        %v1091 = vrot.slane %v1083, 7
        %v1092 = vrot.slane %v1084, 7
        %v1093 = vsel %vm337, %v1091, %v1092
        %v1094 = vsel %vm337, %v1090, %v1091
        %v1095 = vsel %vm337, %v1089, %v1090
        %v1096 = vsel %vm337, %v1088, %v1089
        %v1097 = vsel %vm337, %v1087, %v1088
        %v1098 = vsel %vm337, %v1086, %v1087
        %v1099 = vsel %vm337, %v1085, %v1086
        %v1100 = vsel %vm337, %v1092, %v1085
        %v1101 = vsel %vm346, %v1100, 0.0
        %v1102 = vsel %vm346, %v1099, 0.0
        %v1103 = vsel %vm346, %v1098, 0.0
        %v1104 = vsel %vm346, %v1097, 0.0
        %v1105 = vsel %vm346, %v1096, 0.0
        %v1106 = vsel %vm346, %v1095, 0.0
        %v1107 = vsel %vm346, %v1094, 0.0
        %v1108 = vsel %vm346, %v1093, 0.0
        %v1109 = vrot.slane %v1077, 1
        %v1110 = vrot.slane %v1078, 1
        %v1111 = vrot.slane %v1079, 1
        %v1112 = vrot.slane %v1080, 1
        %v1113 = vrot.slane %v1081, 1
        %v1114 = vrot.slane %v1082, 1
        %v1115 = vrot.slane %v1083, 1
        %v1116 = vrot.slane %v1084, 1
        %vm1117 = vcmp.lt.s32.totalorder %v294, 7
        %v1118 = vsel %vm1117, %v1115, %v1116
        %v1119 = vsel %vm1117, %v1114, %v1115
        %v1120 = vsel %vm1117, %v1113, %v1114
        %v1121 = vsel %vm1117, %v1112, %v1113
        %v1122 = vsel %vm1117, %v1111, %v1112
        %v1123 = vsel %vm1117, %v1110, %v1111
        %v1124 = vsel %vm1117, %v1109, %v1110
        %v1125 = vsel %vm1117, %v1116, %v1109
        %v1126 = vsel %vm296, 1, 0
        %vm1127 = vcmp.eq.s32.totalorder %v1126, 1
        %v1128 = vsel %vm1127, %v1124, 0.0
        %v1129 = vsel %vm1127, %v1123, 0.0
        %v1130 = vsel %vm1127, %v1122, 0.0
        %v1131 = vsel %vm1127, %v1121, 0.0
        %v1132 = vsel %vm1127, %v1120, 0.0
        %v1133 = vsel %vm1127, %v1119, 0.0
        %v1134 = vsel %vm1127, %v1118, 0.0
        %v1135 = vsel %vm1127, %v1125, 0.0
        %1143 = vrot.lane.b32.xlu0 %v1077, 32
        %v1144 = vpop.permute.xlu0 %1143
        %1145 = vrot.lane.b32.xlu0 %v1078, 32
        %v1146 = vpop.permute.xlu0 %1145
        %1147 = vrot.lane.b32.xlu0 %v1079, 32
        %v1148 = vpop.permute.xlu0 %1147
        %1149 = vrot.lane.b32.xlu0 %v1080, 32
        %v1150 = vpop.permute.xlu0 %1149
        %1151 = vrot.lane.b32.xlu0 %v1081, 32
        %v1152 = vpop.permute.xlu0 %1151
        %1153 = vrot.lane.b32.xlu0 %v1082, 32
        %v1154 = vpop.permute.xlu0 %1153
        %1155 = vrot.lane.b32.xlu0 %v1083, 32
        %v1156 = vpop.permute.xlu0 %1155
        %1172 = vrot.lane.b32.xlu0 %v1101, 64
        %v1173 = vpop.permute.xlu0 %1172
        %1174 = vrot.lane.b32.xlu0 %v1102, 64
        %v1175 = vpop.permute.xlu0 %1174
        %1176 = vrot.lane.b32.xlu0 %v1103, 64
        %v1177 = vpop.permute.xlu0 %1176
        %1178 = vrot.lane.b32.xlu0 %v1104, 64
        %v1179 = vpop.permute.xlu0 %1178
        %1180 = vrot.lane.b32.xlu0 %v1105, 64
        %v1181 = vpop.permute.xlu0 %1180
        %1182 = vrot.lane.b32.xlu0 %v1106, 64
        %v1183 = vpop.permute.xlu0 %1182
        %1184 = vrot.lane.b32.xlu0 %v1107, 64
        %v1185 = vpop.permute.xlu0 %1184
        %1186 = vrot.lane.b32.xlu0 %v1108, 64
        %v1187 = vpop.permute.xlu0 %1186
        %1196 = vrot.lane.b32.xlu0 0.0, 96
        %v1197 = vpop.permute.xlu0 %1196
        %1198 = vrot.lane.b32.xlu0 %v1101, 96
        %v1199 = vpop.permute.xlu0 %1198
        %1200 = vrot.lane.b32.xlu0 %v1102, 96
        %v1201 = vpop.permute.xlu0 %1200
        %1202 = vrot.lane.b32.xlu0 %v1103, 96
        %v1203 = vpop.permute.xlu0 %1202
        %1204 = vrot.lane.b32.xlu0 %v1104, 96
        %v1205 = vpop.permute.xlu0 %1204
        %1206 = vrot.lane.b32.xlu0 %v1105, 96
        %v1207 = vpop.permute.xlu0 %1206
        %1208 = vrot.lane.b32.xlu0 %v1106, 96
        %v1209 = vpop.permute.xlu0 %1208
        %1210 = vrot.lane.b32.xlu0 %v1107, 96
        %v1211 = vpop.permute.xlu0 %1210
        %v1220 = vsel %vm525, %v1077, %v414
        %v1221 = vsel %vm525, %v1078, %v1144
        %v1222 = vsel %vm525, %v1079, %v1146
        %v1223 = vsel %vm525, %v1080, %v1148
        %v1224 = vsel %vm525, %v1081, %v1150
        %v1225 = vsel %vm525, %v1082, %v1152
        %v1226 = vsel %vm525, %v1083, %v1154
        %v1227 = vsel %vm525, %v1084, %v1156
        %v1228 = vsel %vm534, %v1220, %v1173
        %v1229 = vsel %vm534, %v1221, %v1175
        %v1230 = vsel %vm534, %v1222, %v1177
        %v1231 = vsel %vm534, %v1223, %v1179
        %v1232 = vsel %vm534, %v1224, %v1181
        %v1233 = vsel %vm534, %v1225, %v1183
        %v1234 = vsel %vm534, %v1226, %v1185
        %v1235 = vsel %vm534, %v1227, %v1187
        %v1236 = vsel %vm543, %v1228, %v1197
        %v1237 = vsel %vm543, %v1229, %v1199
        %v1238 = vsel %vm543, %v1230, %v1201
        %v1239 = vsel %vm543, %v1231, %v1203
        %v1240 = vsel %vm543, %v1232, %v1205
        %v1241 = vsel %vm543, %v1233, %v1207
        %v1242 = vsel %vm543, %v1234, %v1209
        %v1243 = vsel %vm543, %v1235, %v1211
        %v1244 = vld [vmem:[%s4] sm:$0xff]
        %v1245 = vld [vmem:[%s4 + $0x8] sm:$0xff]
        %v1246 = vld [vmem:[%s4 + $0x10] sm:$0xff]
        %v1247 = vld [vmem:[%s4 + $0x18] sm:$0xff]
        %v1248 = vld [vmem:[%s4 + $0x20] sm:$0xff]
        %v1249 = vld [vmem:[%s4 + $0x28] sm:$0xff]
        %v1250 = vld [vmem:[%s4 + $0x30] sm:$0xff]
        %v1251 = vld [vmem:[%s4 + $0x38] sm:$0xff]
        %v1252 = vld [vmem:[%s4 + $0x40] sm:$0xff]
        %v1253 = vld [vmem:[%s4 + $0x48] sm:$0xff]
        %v1254 = vld [vmem:[%s4 + $0x50] sm:$0xff]
        %v1255 = vld [vmem:[%s4 + $0x58] sm:$0xff]
        %v1256 = vld [vmem:[%s4 + $0x60] sm:$0xff]
        %v1257 = vld [vmem:[%s4 + $0x68] sm:$0xff]
        %v1258 = vld [vmem:[%s4 + $0x70] sm:$0xff]
        %v1259 = vld [vmem:[%s4 + $0x78] sm:$0xff]
        %1260 = vmatprep.subr.mxu0 0.0
        %1261 = vmatpush1.msra.mxu0 %v1244
        %1262 = vmatprep.subr.mxu0 0.0
        %1263 = vmatpush1.msra.mxu0 %v1245
        %1264 = vmatprep.subr.mxu0 0.0
        %1265 = vmatpush1.msra.mxu0 %v1246
        %1266 = vmatprep.subr.mxu0 0.0
        %1267 = vmatpush1.msra.mxu0 %v1247
        %1268 = vmatprep.subr.mxu0 0.0
        %1269 = vmatpush1.msra.mxu0 %v1248
        %1270 = vmatprep.subr.mxu0 0.0
        %1271 = vmatpush1.msra.mxu0 %v1249
        %1272 = vmatprep.subr.mxu0 0.0
        %1273 = vmatpush1.msra.mxu0 %v1250
        %1274 = vmatprep.subr.mxu0 0.0
        %1275 = vmatpush1.msra.mxu0 %v1251
        %1276 = vmatprep.subr.mxu0 0.0
        %1277 = vmatpush1.msra.mxu0 %v1252
        %1278 = vmatprep.subr.mxu0 0.0
        %1279 = vmatpush1.msra.mxu0 %v1253
        %1280 = vmatprep.subr.mxu0 0.0
        %1281 = vmatpush1.msra.mxu0 %v1254
        %1282 = vmatprep.subr.mxu0 0.0
        %1283 = vmatpush1.msra.mxu0 %v1255
        %1284 = vmatprep.subr.mxu0 0.0
        %1285 = vmatpush1.msra.mxu0 %v1256
        %1286 = vmatprep.subr.mxu0 0.0
        %1287 = vmatpush1.msra.mxu0 %v1257
        %1288 = vmatprep.subr.mxu0 0.0
        %1289 = vmatpush1.msra.mxu0 %v1258
        %1290 = vmatprep.subr.mxu0 0.0
        %1291 = vmatpush1.msra.mxu0 %v1259
        %1292 = vmatprep.subr.mxu0 0.0
        %1293 = vmatpush1.msra.mxu0 0.0
        %1294 = vmatprep.subr.mxu0 0.0
        %1295 = vmatpush1.msra.mxu0 0.0
        %1296 = vmatprep.subr.mxu0 0.0
        %1297 = vmatpush1.msra.mxu0 0.0
        %1298 = vmatprep.subr.mxu0 0.0
        %1299 = vmatpush1.msra.mxu0 0.0
        %1300 = vmatprep.subr.mxu0 0.0
        %1301 = vmatpush1.msra.mxu0 0.0
        %1302 = vmatprep.subr.mxu0 0.0
        %1303 = vmatpush1.msra.mxu0 0.0
        %1304 = vmatprep.subr.mxu0 0.0
        %1305 = vmatpush1.msra.mxu0 0.0
        %1306 = vmatprep.subr.mxu0 0.0
        %1307 = vmatpush1.msra.mxu0 0.0
        %1308 = vmatprep.subr.mxu0 0.0
        %1309 = vmatpush1.msra.mxu0 0.0
        %1310 = vmatprep.subr.mxu0 0.0
        %1311 = vmatpush1.msra.mxu0 0.0
        %1312 = vmatprep.subr.mxu0 0.0
        %1313 = vmatpush1.msra.mxu0 0.0
        %1314 = vmatprep.subr.mxu0 0.0
        %1315 = vmatpush1.msra.mxu0 0.0
        %1316 = vmatprep.subr.mxu0 0.0
        %1317 = vmatpush1.msra.mxu0 0.0
        %1318 = vmatprep.subr.mxu0 0.0
        %1319 = vmatpush1.msra.mxu0 0.0
        %1320 = vmatprep.subr.mxu0 0.0
        %1321 = vmatpush1.msra.mxu0 0.0
        %1322 = vmatprep.subr.mxu0 0.0
        %1323 = vmatpush1.msra.mxu0 0.0
        %1324 = vmatprep.mubr.f32.mxu0 0.0
        %1325 = vmatmul.mubr.f32.gmra.mrb[0].mxu0 %v1236
        %v1326 = vpop.f32.mrb[0].mxu0
        %v1327 = vadd.f32 0.0, %v1326
        %v1328 = vpop.f32.mrb[0].mxu0
        %1329 = vmatprep.mubr.f32.mxu0 0.0
        %1330 = vmatmul.mubr.f32.gmra.mrb[0].mxu0 %v1237
        %v1331 = vpop.f32.mrb[0].mxu0
        %v1332 = vadd.f32 0.0, %v1331
        %v1333 = vpop.f32.mrb[0].mxu0
        %1334 = vmatprep.mubr.f32.mxu0 0.0
        %1335 = vmatmul.mubr.f32.gmra.mrb[0].mxu0 %v1238
        %v1336 = vpop.f32.mrb[0].mxu0
        %v1337 = vadd.f32 0.0, %v1336
        %v1338 = vpop.f32.mrb[0].mxu0
        %1339 = vmatprep.mubr.f32.mxu0 0.0
        %1340 = vmatmul.mubr.f32.gmra.mrb[0].mxu0 %v1239
        %v1341 = vpop.f32.mrb[0].mxu0
        %v1342 = vadd.f32 0.0, %v1341
        %v1343 = vpop.f32.mrb[0].mxu0
        %1344 = vmatprep.mubr.f32.mxu0 0.0
        %1345 = vmatmul.mubr.f32.gmra.mrb[0].mxu0 %v1240
        %v1346 = vpop.f32.mrb[0].mxu0
        %v1347 = vadd.f32 0.0, %v1346
        %v1348 = vpop.f32.mrb[0].mxu0
        %1349 = vmatprep.mubr.f32.mxu0 0.0
        %1350 = vmatmul.mubr.f32.gmra.mrb[0].mxu0 %v1241
        %v1351 = vpop.f32.mrb[0].mxu0
        %v1352 = vadd.f32 0.0, %v1351
        %v1353 = vpop.f32.mrb[0].mxu0
        %1354 = vmatprep.mubr.f32.mxu0 0.0
        %1355 = vmatmul.mubr.f32.gmra.mrb[0].mxu0 %v1242
        %v1356 = vpop.f32.mrb[0].mxu0
        %v1357 = vadd.f32 0.0, %v1356
        %v1358 = vpop.f32.mrb[0].mxu0
        %1359 = vmatprep.mubr.f32.mxu0 0.0
        %1360 = vmatmul.mubr.f32.gmra.mrb[0].mxu0 %v1243
        %v1361 = vpop.f32.mrb[0].mxu0
        %v1362 = vadd.f32 0.0, %v1361
        %v1363 = vpop.f32.mrb[0].mxu0
        %1364 = vdwg.mxu0
        %1366 = vrot.lane.b32.xlu0 %v1084, 32
        %v1367 = vpop.permute.xlu0 %1366
        %1376 = vrot.lane.b32.xlu0 %v1128, 64
        %v1377 = vpop.permute.xlu0 %1376
        %1378 = vrot.lane.b32.xlu0 %v1129, 64
        %v1379 = vpop.permute.xlu0 %1378
        %1380 = vrot.lane.b32.xlu0 %v1130, 64
        %v1381 = vpop.permute.xlu0 %1380
        %1382 = vrot.lane.b32.xlu0 %v1131, 64
        %v1383 = vpop.permute.xlu0 %1382
        %1384 = vrot.lane.b32.xlu0 %v1132, 64
        %v1385 = vpop.permute.xlu0 %1384
        %1386 = vrot.lane.b32.xlu0 %v1133, 64
        %v1387 = vpop.permute.xlu0 %1386
        %1388 = vrot.lane.b32.xlu0 %v1134, 64
        %v1389 = vpop.permute.xlu0 %1388
        %1397 = vrot.lane.b32.xlu0 %v1077, 96
        %v1398 = vpop.permute.xlu0 %1397
        %1399 = vrot.lane.b32.xlu0 %v1078, 96
        %v1400 = vpop.permute.xlu0 %1399
        %1401 = vrot.lane.b32.xlu0 %v1079, 96
        %v1402 = vpop.permute.xlu0 %1401
        %1403 = vrot.lane.b32.xlu0 %v1080, 96
        %v1404 = vpop.permute.xlu0 %1403
        %1405 = vrot.lane.b32.xlu0 %v1081, 96
        %v1406 = vpop.permute.xlu0 %1405
        %1407 = vrot.lane.b32.xlu0 %v1082, 96
        %v1408 = vpop.permute.xlu0 %1407
        %1409 = vrot.lane.b32.xlu0 %v1083, 96
        %v1410 = vpop.permute.xlu0 %1409
        %v1418 = vsel %vm525, %v1128, %v1144
        %v1419 = vsel %vm525, %v1129, %v1146
        %v1420 = vsel %vm525, %v1130, %v1148
        %v1421 = vsel %vm525, %v1131, %v1150
        %v1422 = vsel %vm525, %v1132, %v1152
        %v1423 = vsel %vm525, %v1133, %v1154
        %v1424 = vsel %vm525, %v1134, %v1156
        %v1425 = vsel %vm525, %v1135, %v1367
        %v1426 = vsel %vm534, %v1418, %v438
        %v1427 = vsel %vm534, %v1419, %v1377
        %v1428 = vsel %vm534, %v1420, %v1379
        %v1429 = vsel %vm534, %v1421, %v1381
        %v1430 = vsel %vm534, %v1422, %v1383
        %v1431 = vsel %vm534, %v1423, %v1385
        %v1432 = vsel %vm534, %v1424, %v1387
        %v1433 = vsel %vm534, %v1425, %v1389
        %v1434 = vsel %vm543, %v1426, %v1197
        %v1435 = vsel %vm543, %v1427, %v1398
        %v1436 = vsel %vm543, %v1428, %v1400
        %v1437 = vsel %vm543, %v1429, %v1402
        %v1438 = vsel %vm543, %v1430, %v1404
        %v1439 = vsel %vm543, %v1431, %v1406
        %v1440 = vsel %vm543, %v1432, %v1408
        %v1441 = vsel %vm543, %v1433, %v1410
        %s1442 = scalar_lea.vmem %s4, 128
        %v1443 = vld [vmem:[%s1442] sm:$0xff]
        %v1444 = vld [vmem:[%s1442 + $0x8] sm:$0xff]
        %v1445 = vld [vmem:[%s1442 + $0x10] sm:$0xff]
        %v1446 = vld [vmem:[%s1442 + $0x18] sm:$0xff]
        %v1447 = vld [vmem:[%s1442 + $0x20] sm:$0xff]
        %v1448 = vld [vmem:[%s1442 + $0x28] sm:$0xff]
        %v1449 = vld [vmem:[%s1442 + $0x30] sm:$0xff]
        %v1450 = vld [vmem:[%s1442 + $0x38] sm:$0xff]
        %v1451 = vld [vmem:[%s1442 + $0x40] sm:$0xff]
        %v1452 = vld [vmem:[%s1442 + $0x48] sm:$0xff]
        %v1453 = vld [vmem:[%s1442 + $0x50] sm:$0xff]
        %v1454 = vld [vmem:[%s1442 + $0x58] sm:$0xff]
        %v1455 = vld [vmem:[%s1442 + $0x60] sm:$0xff]
        %v1456 = vld [vmem:[%s1442 + $0x68] sm:$0xff]
        %v1457 = vld [vmem:[%s1442 + $0x70] sm:$0xff]
        %v1458 = vld [vmem:[%s1442 + $0x78] sm:$0xff]
        %1459 = vmatprep.subr.mxu0 0.0
        %1460 = vmatpush1.msra.mxu0 %v1443
        %1461 = vmatprep.subr.mxu0 0.0
        %1462 = vmatpush1.msra.mxu0 %v1444
        %1463 = vmatprep.subr.mxu0 0.0
        %1464 = vmatpush1.msra.mxu0 %v1445
        %1465 = vmatprep.subr.mxu0 0.0
        %1466 = vmatpush1.msra.mxu0 %v1446
        %1467 = vmatprep.subr.mxu0 0.0
        %1468 = vmatpush1.msra.mxu0 %v1447
        %1469 = vmatprep.subr.mxu0 0.0
        %1470 = vmatpush1.msra.mxu0 %v1448
        %1471 = vmatprep.subr.mxu0 0.0
        %1472 = vmatpush1.msra.mxu0 %v1449
        %1473 = vmatprep.subr.mxu0 0.0
        %1474 = vmatpush1.msra.mxu0 %v1450
        %1475 = vmatprep.subr.mxu0 0.0
        %1476 = vmatpush1.msra.mxu0 %v1451
        %1477 = vmatprep.subr.mxu0 0.0
        %1478 = vmatpush1.msra.mxu0 %v1452
        %1479 = vmatprep.subr.mxu0 0.0
        %1480 = vmatpush1.msra.mxu0 %v1453
        %1481 = vmatprep.subr.mxu0 0.0
        %1482 = vmatpush1.msra.mxu0 %v1454
        %1483 = vmatprep.subr.mxu0 0.0
        %1484 = vmatpush1.msra.mxu0 %v1455
        %1485 = vmatprep.subr.mxu0 0.0
        %1486 = vmatpush1.msra.mxu0 %v1456
        %1487 = vmatprep.subr.mxu0 0.0
        %1488 = vmatpush1.msra.mxu0 %v1457
        %1489 = vmatprep.subr.mxu0 0.0
        %1490 = vmatpush1.msra.mxu0 %v1458
        %1491 = vmatprep.subr.mxu0 0.0
        %1492 = vmatpush1.msra.mxu0 0.0
        %1493 = vmatprep.subr.mxu0 0.0
        %1494 = vmatpush1.msra.mxu0 0.0
        %1495 = vmatprep.subr.mxu0 0.0
        %1496 = vmatpush1.msra.mxu0 0.0
        %1497 = vmatprep.subr.mxu0 0.0
        %1498 = vmatpush1.msra.mxu0 0.0
        %1499 = vmatprep.subr.mxu0 0.0
        %1500 = vmatpush1.msra.mxu0 0.0
        %1501 = vmatprep.subr.mxu0 0.0
        %1502 = vmatpush1.msra.mxu0 0.0
        %1503 = vmatprep.subr.mxu0 0.0
        %1504 = vmatpush1.msra.mxu0 0.0
        %1505 = vmatprep.subr.mxu0 0.0
        %1506 = vmatpush1.msra.mxu0 0.0
        %1507 = vmatprep.subr.mxu0 0.0
        %1508 = vmatpush1.msra.mxu0 0.0
        %1509 = vmatprep.subr.mxu0 0.0
        %1510 = vmatpush1.msra.mxu0 0.0
        %1511 = vmatprep.subr.mxu0 0.0
        %1512 = vmatpush1.msra.mxu0 0.0
        %1513 = vmatprep.subr.mxu0 0.0
        %1514 = vmatpush1.msra.mxu0 0.0
        %1515 = vmatprep.subr.mxu0 0.0
        %1516 = vmatpush1.msra.mxu0 0.0
        %1517 = vmatprep.subr.mxu0 0.0
        %1518 = vmatpush1.msra.mxu0 0.0
        %1519 = vmatprep.subr.mxu0 0.0
        %1520 = vmatpush1.msra.mxu0 0.0
        %1521 = vmatprep.subr.mxu0 0.0
        %1522 = vmatpush1.msra.mxu0 0.0
        %1523 = vmatprep.mubr.f32.mxu0 0.0
        %1524 = vmatmul.mubr.f32.gmra.mrb[0].mxu0 %v1434
        %v1525 = vpop.f32.mrb[0].mxu0
        %v1526 = vadd.f32 0.0, %v1525
        %v1527 = vpop.f32.mrb[0].mxu0
        %1528 = vmatprep.mubr.f32.mxu0 0.0
        %1529 = vmatmul.mubr.f32.gmra.mrb[0].mxu0 %v1435
        %v1530 = vpop.f32.mrb[0].mxu0
        %v1531 = vadd.f32 0.0, %v1530
        %v1532 = vpop.f32.mrb[0].mxu0
        %1533 = vmatprep.mubr.f32.mxu0 0.0
        %1534 = vmatmul.mubr.f32.gmra.mrb[0].mxu0 %v1436
        %v1535 = vpop.f32.mrb[0].mxu0
        %v1536 = vadd.f32 0.0, %v1535
        %v1537 = vpop.f32.mrb[0].mxu0
        %1538 = vmatprep.mubr.f32.mxu0 0.0
        %1539 = vmatmul.mubr.f32.gmra.mrb[0].mxu0 %v1437
        %v1540 = vpop.f32.mrb[0].mxu0
        %v1541 = vadd.f32 0.0, %v1540
        %v1542 = vpop.f32.mrb[0].mxu0
        %1543 = vmatprep.mubr.f32.mxu0 0.0
        %1544 = vmatmul.mubr.f32.gmra.mrb[0].mxu0 %v1438
        %v1545 = vpop.f32.mrb[0].mxu0
        %v1546 = vadd.f32 0.0, %v1545
        %v1547 = vpop.f32.mrb[0].mxu0
        %1548 = vmatprep.mubr.f32.mxu0 0.0
        %1549 = vmatmul.mubr.f32.gmra.mrb[0].mxu0 %v1439
        %v1550 = vpop.f32.mrb[0].mxu0
        %v1551 = vadd.f32 0.0, %v1550
        %v1552 = vpop.f32.mrb[0].mxu0
        %1553 = vmatprep.mubr.f32.mxu0 0.0
        %1554 = vmatmul.mubr.f32.gmra.mrb[0].mxu0 %v1440
        %v1555 = vpop.f32.mrb[0].mxu0
        %v1556 = vadd.f32 0.0, %v1555
        %v1557 = vpop.f32.mrb[0].mxu0
        %1558 = vmatprep.mubr.f32.mxu0 0.0
        %1559 = vmatmul.mubr.f32.gmra.mrb[0].mxu0 %v1441
        %v1560 = vpop.f32.mrb[0].mxu0
        %v1561 = vadd.f32 0.0, %v1560
        %v1562 = vpop.f32.mrb[0].mxu0
        %1563 = vdwg.mxu0
        %1564 = vrot.lane.b32.xlu0 %v1108, 96
        %v1565 = vpop.permute.xlu0 %1564
        %v1567 = vsel %vm525, 0.0, %v1367
        %v1568 = vsel %vm534, %v1567, %v438
        %v1569 = vsel %vm543, %v1568, %v1565
        %s1570 = scalar_lea.vmem %s4, 256
        %v1571 = vld [vmem:[%s1570] sm:$0xff]
        %v1572 = vld [vmem:[%s1570 + $0x8] sm:$0xff]
        %v1573 = vld [vmem:[%s1570 + $0x10] sm:$0xff]
        %v1574 = vld [vmem:[%s1570 + $0x18] sm:$0xff]
        %v1575 = vld [vmem:[%s1570 + $0x20] sm:$0xff]
        %v1576 = vld [vmem:[%s1570 + $0x28] sm:$0xff]
        %v1577 = vld [vmem:[%s1570 + $0x30] sm:$0xff]
        %v1578 = vld [vmem:[%s1570 + $0x38] sm:$0xff]
        %v1579 = vld [vmem:[%s1570 + $0x40] sm:$0xff]
        %v1580 = vld [vmem:[%s1570 + $0x48] sm:$0xff]
        %v1581 = vld [vmem:[%s1570 + $0x50] sm:$0xff]
        %v1582 = vld [vmem:[%s1570 + $0x58] sm:$0xff]
        %v1583 = vld [vmem:[%s1570 + $0x60] sm:$0xff]
        %v1584 = vld [vmem:[%s1570 + $0x68] sm:$0xff]
        %v1585 = vld [vmem:[%s1570 + $0x70] sm:$0xff]
        %v1586 = vld [vmem:[%s1570 + $0x78] sm:$0xff]
        %1587 = vmatprep.subr.mxu0 0.0
        %1588 = vmatpush1.msra.mxu0 %v1571
        %1589 = vmatprep.subr.mxu0 0.0
        %1590 = vmatpush1.msra.mxu0 %v1572
        %1591 = vmatprep.subr.mxu0 0.0
        %1592 = vmatpush1.msra.mxu0 %v1573
        %1593 = vmatprep.subr.mxu0 0.0
        %1594 = vmatpush1.msra.mxu0 %v1574
        %1595 = vmatprep.subr.mxu0 0.0
        %1596 = vmatpush1.msra.mxu0 %v1575
        %1597 = vmatprep.subr.mxu0 0.0
        %1598 = vmatpush1.msra.mxu0 %v1576
        %1599 = vmatprep.subr.mxu0 0.0
        %1600 = vmatpush1.msra.mxu0 %v1577
        %1601 = vmatprep.subr.mxu0 0.0
        %1602 = vmatpush1.msra.mxu0 %v1578
        %1603 = vmatprep.subr.mxu0 0.0
        %1604 = vmatpush1.msra.mxu0 %v1579
        %1605 = vmatprep.subr.mxu0 0.0
        %1606 = vmatpush1.msra.mxu0 %v1580
        %1607 = vmatprep.subr.mxu0 0.0
        %1608 = vmatpush1.msra.mxu0 %v1581
        %1609 = vmatprep.subr.mxu0 0.0
        %1610 = vmatpush1.msra.mxu0 %v1582
        %1611 = vmatprep.subr.mxu0 0.0
        %1612 = vmatpush1.msra.mxu0 %v1583
        %1613 = vmatprep.subr.mxu0 0.0
        %1614 = vmatpush1.msra.mxu0 %v1584
        %1615 = vmatprep.subr.mxu0 0.0
        %1616 = vmatpush1.msra.mxu0 %v1585
        %1617 = vmatprep.subr.mxu0 0.0
        %1618 = vmatpush1.msra.mxu0 %v1586
        %1619 = vmatprep.subr.mxu0 0.0
        %1620 = vmatpush1.msra.mxu0 0.0
        %1621 = vmatprep.subr.mxu0 0.0
        %1622 = vmatpush1.msra.mxu0 0.0
        %1623 = vmatprep.subr.mxu0 0.0
        %1624 = vmatpush1.msra.mxu0 0.0
        %1625 = vmatprep.subr.mxu0 0.0
        %1626 = vmatpush1.msra.mxu0 0.0
        %1627 = vmatprep.subr.mxu0 0.0
        %1628 = vmatpush1.msra.mxu0 0.0
        %1629 = vmatprep.subr.mxu0 0.0
        %1630 = vmatpush1.msra.mxu0 0.0
        %1631 = vmatprep.subr.mxu0 0.0
        %1632 = vmatpush1.msra.mxu0 0.0
        %1633 = vmatprep.subr.mxu0 0.0
        %1634 = vmatpush1.msra.mxu0 0.0
        %1635 = vmatprep.subr.mxu0 0.0
        %1636 = vmatpush1.msra.mxu0 0.0
        %1637 = vmatprep.subr.mxu0 0.0
        %1638 = vmatpush1.msra.mxu0 0.0
        %1639 = vmatprep.subr.mxu0 0.0
        %1640 = vmatpush1.msra.mxu0 0.0
        %1641 = vmatprep.subr.mxu0 0.0
        %1642 = vmatpush1.msra.mxu0 0.0
        %1643 = vmatprep.subr.mxu0 0.0
        %1644 = vmatpush1.msra.mxu0 0.0
        %1645 = vmatprep.subr.mxu0 0.0
        %1646 = vmatpush1.msra.mxu0 0.0
        %1647 = vmatprep.subr.mxu0 0.0
        %1648 = vmatpush1.msra.mxu0 0.0
        %1649 = vmatprep.subr.mxu0 0.0
        %1650 = vmatpush1.msra.mxu0 0.0
        %1651 = vmatprep.mubr.f32.mxu0 0.0
        %1652 = vmatmul.mubr.f32.gmra.mrb[0].mxu0 %v1237
        %v1653 = vpop.f32.mrb[0].mxu0
        %v1654 = vadd.f32 0.0, %v1653
        %v1655 = vpop.f32.mrb[0].mxu0
        %1656 = vmatprep.mubr.f32.mxu0 0.0
        %1657 = vmatmul.mubr.f32.gmra.mrb[0].mxu0 %v1238
        %v1658 = vpop.f32.mrb[0].mxu0
        %v1659 = vadd.f32 0.0, %v1658
        %v1660 = vpop.f32.mrb[0].mxu0
        %1661 = vmatprep.mubr.f32.mxu0 0.0
        %1662 = vmatmul.mubr.f32.gmra.mrb[0].mxu0 %v1239
        %v1663 = vpop.f32.mrb[0].mxu0
        %v1664 = vadd.f32 0.0, %v1663
        %v1665 = vpop.f32.mrb[0].mxu0
        %1666 = vmatprep.mubr.f32.mxu0 0.0
        %1667 = vmatmul.mubr.f32.gmra.mrb[0].mxu0 %v1240
        %v1668 = vpop.f32.mrb[0].mxu0
        %v1669 = vadd.f32 0.0, %v1668
        %v1670 = vpop.f32.mrb[0].mxu0
        %1671 = vmatprep.mubr.f32.mxu0 0.0
        %1672 = vmatmul.mubr.f32.gmra.mrb[0].mxu0 %v1241
        %v1673 = vpop.f32.mrb[0].mxu0
        %v1674 = vadd.f32 0.0, %v1673
        %v1675 = vpop.f32.mrb[0].mxu0
        %1676 = vmatprep.mubr.f32.mxu0 0.0
        %1677 = vmatmul.mubr.f32.gmra.mrb[0].mxu0 %v1242
        %v1678 = vpop.f32.mrb[0].mxu0
        %v1679 = vadd.f32 0.0, %v1678
        %v1680 = vpop.f32.mrb[0].mxu0
        %1681 = vmatprep.mubr.f32.mxu0 0.0
        %1682 = vmatmul.mubr.f32.gmra.mrb[0].mxu0 %v1243
        %v1683 = vpop.f32.mrb[0].mxu0
        %v1684 = vadd.f32 0.0, %v1683
        %v1685 = vpop.f32.mrb[0].mxu0
        %1686 = vmatprep.mubr.f32.mxu0 0.0
        %1687 = vmatmul.mubr.f32.gmra.mrb[0].mxu0 %v1569
        %v1688 = vpop.f32.mrb[0].mxu0
        %v1689 = vadd.f32 0.0, %v1688
        %v1690 = vpop.f32.mrb[0].mxu0
        %1691 = vdwg.mxu0
        %1693 = vrot.lane.b32.xlu0 %v1135, 64
        %v1694 = vpop.permute.xlu0 %1693
        %1696 = vrot.lane.b32.xlu0 %v1084, 96
        %v1697 = vpop.permute.xlu0 %1696
        %v1699 = vsel %vm534, %v526, %v1694
        %v1700 = vsel %vm543, %v1699, %v1697
        %s1701 = scalar_lea.vmem %s4, 384
        %v1702 = vld [vmem:[%s1701] sm:$0xff]
        %v1703 = vld [vmem:[%s1701 + $0x8] sm:$0xff]
        %v1704 = vld [vmem:[%s1701 + $0x10] sm:$0xff]
        %v1705 = vld [vmem:[%s1701 + $0x18] sm:$0xff]
        %v1706 = vld [vmem:[%s1701 + $0x20] sm:$0xff]
        %v1707 = vld [vmem:[%s1701 + $0x28] sm:$0xff]
        %v1708 = vld [vmem:[%s1701 + $0x30] sm:$0xff]
        %v1709 = vld [vmem:[%s1701 + $0x38] sm:$0xff]
        %v1710 = vld [vmem:[%s1701 + $0x40] sm:$0xff]
        %v1711 = vld [vmem:[%s1701 + $0x48] sm:$0xff]
        %v1712 = vld [vmem:[%s1701 + $0x50] sm:$0xff]
        %v1713 = vld [vmem:[%s1701 + $0x58] sm:$0xff]
        %v1714 = vld [vmem:[%s1701 + $0x60] sm:$0xff]
        %v1715 = vld [vmem:[%s1701 + $0x68] sm:$0xff]
        %v1716 = vld [vmem:[%s1701 + $0x70] sm:$0xff]
        %v1717 = vld [vmem:[%s1701 + $0x78] sm:$0xff]
        %1718 = vmatprep.subr.mxu0 0.0
        %1719 = vmatpush1.msra.mxu0 %v1702
        %1720 = vmatprep.subr.mxu0 0.0
        %1721 = vmatpush1.msra.mxu0 %v1703
        %1722 = vmatprep.subr.mxu0 0.0
        %1723 = vmatpush1.msra.mxu0 %v1704
        %1724 = vmatprep.subr.mxu0 0.0
        %1725 = vmatpush1.msra.mxu0 %v1705
        %1726 = vmatprep.subr.mxu0 0.0
        %1727 = vmatpush1.msra.mxu0 %v1706
        %1728 = vmatprep.subr.mxu0 0.0
        %1729 = vmatpush1.msra.mxu0 %v1707
        %1730 = vmatprep.subr.mxu0 0.0
        %1731 = vmatpush1.msra.mxu0 %v1708
        %1732 = vmatprep.subr.mxu0 0.0
        %1733 = vmatpush1.msra.mxu0 %v1709
        %1734 = vmatprep.subr.mxu0 0.0
        %1735 = vmatpush1.msra.mxu0 %v1710
        %1736 = vmatprep.subr.mxu0 0.0
        %1737 = vmatpush1.msra.mxu0 %v1711
        %1738 = vmatprep.subr.mxu0 0.0
        %1739 = vmatpush1.msra.mxu0 %v1712
        %1740 = vmatprep.subr.mxu0 0.0
        %1741 = vmatpush1.msra.mxu0 %v1713
        %1742 = vmatprep.subr.mxu0 0.0
        %1743 = vmatpush1.msra.mxu0 %v1714
        %1744 = vmatprep.subr.mxu0 0.0
        %1745 = vmatpush1.msra.mxu0 %v1715
        %1746 = vmatprep.subr.mxu0 0.0
        %1747 = vmatpush1.msra.mxu0 %v1716
        %1748 = vmatprep.subr.mxu0 0.0
        %1749 = vmatpush1.msra.mxu0 %v1717
        %1750 = vmatprep.subr.mxu0 0.0
        %1751 = vmatpush1.msra.mxu0 0.0
        %1752 = vmatprep.subr.mxu0 0.0
        %1753 = vmatpush1.msra.mxu0 0.0
        %1754 = vmatprep.subr.mxu0 0.0
        %1755 = vmatpush1.msra.mxu0 0.0
        %1756 = vmatprep.subr.mxu0 0.0
        %1757 = vmatpush1.msra.mxu0 0.0
        %1758 = vmatprep.subr.mxu0 0.0
        %1759 = vmatpush1.msra.mxu0 0.0
        %1760 = vmatprep.subr.mxu0 0.0
        %1761 = vmatpush1.msra.mxu0 0.0
        %1762 = vmatprep.subr.mxu0 0.0
        %1763 = vmatpush1.msra.mxu0 0.0
        %1764 = vmatprep.subr.mxu0 0.0
        %1765 = vmatpush1.msra.mxu0 0.0
        %1766 = vmatprep.subr.mxu0 0.0
        %1767 = vmatpush1.msra.mxu0 0.0
        %1768 = vmatprep.subr.mxu0 0.0
        %1769 = vmatpush1.msra.mxu0 0.0
        %1770 = vmatprep.subr.mxu0 0.0
        %1771 = vmatpush1.msra.mxu0 0.0
        %1772 = vmatprep.subr.mxu0 0.0
        %1773 = vmatpush1.msra.mxu0 0.0
        %1774 = vmatprep.subr.mxu0 0.0
        %1775 = vmatpush1.msra.mxu0 0.0
        %1776 = vmatprep.subr.mxu0 0.0
        %1777 = vmatpush1.msra.mxu0 0.0
        %1778 = vmatprep.subr.mxu0 0.0
        %1779 = vmatpush1.msra.mxu0 0.0
        %1780 = vmatprep.subr.mxu0 0.0
        %1781 = vmatpush1.msra.mxu0 0.0
        %1782 = vmatprep.mubr.f32.mxu0 0.0
        %1783 = vmatmul.mubr.f32.gmra.mrb[0].mxu0 %v1435
        %v1784 = vpop.f32.mrb[0].mxu0
        %v1785 = vadd.f32 0.0, %v1784
        %v1786 = vpop.f32.mrb[0].mxu0
        %1787 = vmatprep.mubr.f32.mxu0 0.0
        %1788 = vmatmul.mubr.f32.gmra.mrb[0].mxu0 %v1436
        %v1789 = vpop.f32.mrb[0].mxu0
        %v1790 = vadd.f32 0.0, %v1789
        %v1791 = vpop.f32.mrb[0].mxu0
        %1792 = vmatprep.mubr.f32.mxu0 0.0
        %1793 = vmatmul.mubr.f32.gmra.mrb[0].mxu0 %v1437
        %v1794 = vpop.f32.mrb[0].mxu0
        %v1795 = vadd.f32 0.0, %v1794
        %v1796 = vpop.f32.mrb[0].mxu0
        %1797 = vmatprep.mubr.f32.mxu0 0.0
        %1798 = vmatmul.mubr.f32.gmra.mrb[0].mxu0 %v1438
        %v1799 = vpop.f32.mrb[0].mxu0
        %v1800 = vadd.f32 0.0, %v1799
        %v1801 = vpop.f32.mrb[0].mxu0
        %1802 = vmatprep.mubr.f32.mxu0 0.0
        %1803 = vmatmul.mubr.f32.gmra.mrb[0].mxu0 %v1439
        %v1804 = vpop.f32.mrb[0].mxu0
        %v1805 = vadd.f32 0.0, %v1804
        %v1806 = vpop.f32.mrb[0].mxu0
        %1807 = vmatprep.mubr.f32.mxu0 0.0
        %1808 = vmatmul.mubr.f32.gmra.mrb[0].mxu0 %v1440
        %v1809 = vpop.f32.mrb[0].mxu0
        %v1810 = vadd.f32 0.0, %v1809
        %v1811 = vpop.f32.mrb[0].mxu0
        %1812 = vmatprep.mubr.f32.mxu0 0.0
        %1813 = vmatmul.mubr.f32.gmra.mrb[0].mxu0 %v1441
        %v1814 = vpop.f32.mrb[0].mxu0
        %v1815 = vadd.f32 0.0, %v1814
        %v1816 = vpop.f32.mrb[0].mxu0
        %1817 = vmatprep.mubr.f32.mxu0 0.0
        %1818 = vmatmul.mubr.f32.gmra.mrb[0].mxu0 %v1700
        %v1819 = vpop.f32.mrb[0].mxu0
        %v1820 = vadd.f32 0.0, %v1819
        %v1821 = vpop.f32.mrb[0].mxu0
        %1822 = vdwg.mxu0
        %v1823 = vld [vmem:[%s5] sm:$0x1]
        %v1824 = vld [vmem:[%s6] sm:$0x1]
        %v1825 = vmax.f32 %v1327, 0.0
        %v1826 = vmax.f32 %v1332, 0.0
        %v1827 = vmax.f32 %v1337, 0.0
        %v1828 = vmax.f32 %v1342, 0.0
        %v1829 = vmax.f32 %v1347, 0.0
        %v1830 = vmax.f32 %v1352, 0.0
        %v1831 = vmax.f32 %v1357, 0.0
        %v1832 = vmax.f32 %v1362, 0.0
        %v1833 = vadd.f32 %v277, %v1825
        %v1834 = vadd.f32 %v279, %v1826
        %v1835 = vadd.f32 %v281, %v1827
        %v1836 = vadd.f32 %v283, %v1828
        %v1837 = vadd.f32 %v285, %v1829
        %v1838 = vadd.f32 %v287, %v1830
        %v1839 = vadd.f32 %v289, %v1831
        %v1840 = vadd.f32 %v291, %v1832
        %v1841 = vsel %vm525, %v1833, 0.0
        %1842 = vadd.xlane.f32.xlu0 %v1841
        %v1843 = vpop.xlane.xlu0 %1842
        %v1844 = vsel %vm525, %v1834, 0.0
        %1845 = vadd.xlane.f32.xlu0 %v1844
        %v1846 = vpop.xlane.xlu0 %1845
        %v1847 = vsel %vm525, %v1835, 0.0
        %1848 = vadd.xlane.f32.xlu0 %v1847
        %v1849 = vpop.xlane.xlu0 %1848
        %v1850 = vsel %vm525, %v1836, 0.0
        %1851 = vadd.xlane.f32.xlu0 %v1850
        %v1852 = vpop.xlane.xlu0 %1851
        %v1853 = vsel %vm525, %v1837, 0.0
        %1854 = vadd.xlane.f32.xlu0 %v1853
        %v1855 = vpop.xlane.xlu0 %1854
        %v1856 = vsel %vm525, %v1838, 0.0
        %1857 = vadd.xlane.f32.xlu0 %v1856
        %v1858 = vpop.xlane.xlu0 %1857
        %v1859 = vsel %vm525, %v1839, 0.0
        %1860 = vadd.xlane.f32.xlu0 %v1859
        %v1861 = vpop.xlane.xlu0 %1860
        %v1862 = vsel %vm525, %v1840, 0.0
        %1863 = vadd.xlane.f32.xlu0 %v1862
        %v1864 = vpop.xlane.xlu0 %1863
        %v1865 = vmul.f32 %v1843, 0.03125
        %v1866 = vmul.f32 %v1846, 0.03125
        %v1867 = vmul.f32 %v1849, 0.03125
        %v1868 = vmul.f32 %v1852, 0.03125
        %v1869 = vmul.f32 %v1855, 0.03125
        %v1870 = vmul.f32 %v1858, 0.03125
        %v1871 = vmul.f32 %v1861, 0.03125
        %v1872 = vmul.f32 %v1864, 0.03125
        %v1873 = vsub.f32 %v1833, %v1865
        %v1874 = vsub.f32 %v1834, %v1866
        %v1875 = vsub.f32 %v1835, %v1867
        %v1876 = vsub.f32 %v1836, %v1868
        %v1877 = vsub.f32 %v1837, %v1869
        %v1878 = vsub.f32 %v1838, %v1870
        %v1879 = vsub.f32 %v1839, %v1871
        %v1880 = vsub.f32 %v1840, %v1872
        %v1881 = vmul.f32 %v1873, %v1873
        %v1882 = vmul.f32 %v1874, %v1874
        %v1883 = vmul.f32 %v1875, %v1875
        %v1884 = vmul.f32 %v1876, %v1876
        %v1885 = vmul.f32 %v1877, %v1877
        %v1886 = vmul.f32 %v1878, %v1878
        %v1887 = vmul.f32 %v1879, %v1879
        %v1888 = vmul.f32 %v1880, %v1880
        %v1889 = vsel %vm525, %v1881, 0.0
        %1890 = vadd.xlane.f32.xlu0 %v1889
        %v1891 = vpop.xlane.xlu0 %1890
        %v1892 = vsel %vm525, %v1882, 0.0
        %1893 = vadd.xlane.f32.xlu0 %v1892
        %v1894 = vpop.xlane.xlu0 %1893
        %v1895 = vsel %vm525, %v1883, 0.0
        %1896 = vadd.xlane.f32.xlu0 %v1895
        %v1897 = vpop.xlane.xlu0 %1896
        %v1898 = vsel %vm525, %v1884, 0.0
        %1899 = vadd.xlane.f32.xlu0 %v1898
        %v1900 = vpop.xlane.xlu0 %1899
        %v1901 = vsel %vm525, %v1885, 0.0
        %1902 = vadd.xlane.f32.xlu0 %v1901
        %v1903 = vpop.xlane.xlu0 %1902
        %v1904 = vsel %vm525, %v1886, 0.0
        %1905 = vadd.xlane.f32.xlu0 %v1904
        %v1906 = vpop.xlane.xlu0 %1905
        %v1907 = vsel %vm525, %v1887, 0.0
        %1908 = vadd.xlane.f32.xlu0 %v1907
        %v1909 = vpop.xlane.xlu0 %1908
        %v1910 = vsel %vm525, %v1888, 0.0
        %1911 = vadd.xlane.f32.xlu0 %v1910
        %v1912 = vpop.xlane.xlu0 %1911
        %v1913 = vmul.f32 %v1891, 0.03125
        %v1914 = vmul.f32 %v1894, 0.03125
        %v1915 = vmul.f32 %v1897, 0.03125
        %v1916 = vmul.f32 %v1900, 0.03125
        %v1917 = vmul.f32 %v1903, 0.03125
        %v1918 = vmul.f32 %v1906, 0.03125
        %v1919 = vmul.f32 %v1909, 0.03125
        %v1920 = vmul.f32 %v1912, 0.03125
        %v1921 = vadd.f32 %v1913, 1e-05
        %v1922 = vadd.f32 %v1914, 1e-05
        %v1923 = vadd.f32 %v1915, 1e-05
        %v1924 = vadd.f32 %v1916, 1e-05
        %v1925 = vadd.f32 %v1917, 1e-05
        %v1926 = vadd.f32 %v1918, 1e-05
        %v1927 = vadd.f32 %v1919, 1e-05
        %v1928 = vadd.f32 %v1920, 1e-05
        %v1929 = vrsqrt.pop %v1921
        %v1930 = vrsqrt.pop %v1922
        %v1931 = vrsqrt.pop %v1923
        %v1932 = vrsqrt.pop %v1924
        %v1933 = vrsqrt.pop %v1925
        %v1934 = vrsqrt.pop %v1926
        %v1935 = vrsqrt.pop %v1927
        %v1936 = vrsqrt.pop %v1928
        %v1937 = vmul.f32 %v1873, %v1929
        %v1938 = vmul.f32 %v1874, %v1930
        %v1939 = vmul.f32 %v1875, %v1931
        %v1940 = vmul.f32 %v1876, %v1932
        %v1941 = vmul.f32 %v1877, %v1933
        %v1942 = vmul.f32 %v1878, %v1934
        %v1943 = vmul.f32 %v1879, %v1935
        %v1944 = vmul.f32 %v1880, %v1936
        %v1946 = vlaneseq
        %v1947 = vshrl.u32 %v1946, 7
        %v1948 = vsub.s32 0, %v1947
        %v1949 = vrot.slane %v1823, %v1948
        %v1951 = vmul.f32 %v1937, %v1949
        %v1952 = vmul.f32 %v1938, %v1949
        %v1953 = vmul.f32 %v1939, %v1949
        %v1954 = vmul.f32 %v1940, %v1949
        %v1955 = vmul.f32 %v1941, %v1949
        %v1956 = vmul.f32 %v1942, %v1949
        %v1957 = vmul.f32 %v1943, %v1949
        %v1958 = vmul.f32 %v1944, %v1949
        %v1960 = vlaneseq
        %v1961 = vshrl.u32 %v1960, 7
        %v1962 = vsub.s32 0, %v1961
        %v1963 = vrot.slane %v1824, %v1962
        %v1965 = vadd.f32 %v1951, %v1963
        %v1966 = vadd.f32 %v1952, %v1963
        %v1967 = vadd.f32 %v1953, %v1963
        %v1968 = vadd.f32 %v1954, %v1963
        %v1969 = vadd.f32 %v1955, %v1963
        %v1970 = vadd.f32 %v1956, %v1963
        %v1971 = vadd.f32 %v1957, %v1963
        %v1972 = vadd.f32 %v1958, %v1963
        %v1973 = vmax.f32 %v1526, 0.0
        %v1974 = vmax.f32 %v1531, 0.0
        %v1975 = vmax.f32 %v1536, 0.0
        %v1976 = vmax.f32 %v1541, 0.0
        %v1977 = vmax.f32 %v1546, 0.0
        %v1978 = vmax.f32 %v1551, 0.0
        %v1979 = vmax.f32 %v1556, 0.0
        %v1980 = vmax.f32 %v1561, 0.0
        %1989 = vrot.lane.b32.xlu0 %v1973, 32
        %v1990 = vpop.permute.xlu0 %1989
        %1991 = vrot.lane.b32.xlu0 %v1974, 32
        %v1992 = vpop.permute.xlu0 %1991
        %1993 = vrot.lane.b32.xlu0 %v1975, 32
        %v1994 = vpop.permute.xlu0 %1993
        %1995 = vrot.lane.b32.xlu0 %v1976, 32
        %v1996 = vpop.permute.xlu0 %1995
        %1997 = vrot.lane.b32.xlu0 %v1977, 32
        %v1998 = vpop.permute.xlu0 %1997
        %1999 = vrot.lane.b32.xlu0 %v1978, 32
        %v2000 = vpop.permute.xlu0 %1999
        %2001 = vrot.lane.b32.xlu0 %v1979, 32
        %v2002 = vpop.permute.xlu0 %2001
        %2003 = vrot.lane.b32.xlu0 %v1980, 32
        %v2004 = vpop.permute.xlu0 %2003
        %v2013 = vadd.f32 %v277, %v1990
        %v2014 = vadd.f32 %v279, %v1992
        %v2015 = vadd.f32 %v281, %v1994
        %v2016 = vadd.f32 %v283, %v1996
        %v2017 = vadd.f32 %v285, %v1998
        %v2018 = vadd.f32 %v287, %v2000
        %v2019 = vadd.f32 %v289, %v2002
        %v2020 = vadd.f32 %v291, %v2004
        %2029 = vrot.lane.b32.xlu0 %v2013, 96
        %v2030 = vpop.permute.xlu0 %2029
        %2031 = vrot.lane.b32.xlu0 %v2014, 96
        %v2032 = vpop.permute.xlu0 %2031
        %2033 = vrot.lane.b32.xlu0 %v2015, 96
        %v2034 = vpop.permute.xlu0 %2033
        %2035 = vrot.lane.b32.xlu0 %v2016, 96
        %v2036 = vpop.permute.xlu0 %2035
        %2037 = vrot.lane.b32.xlu0 %v2017, 96
        %v2038 = vpop.permute.xlu0 %2037
        %2039 = vrot.lane.b32.xlu0 %v2018, 96
        %v2040 = vpop.permute.xlu0 %2039
        %2041 = vrot.lane.b32.xlu0 %v2019, 96
        %v2042 = vpop.permute.xlu0 %2041
        %2043 = vrot.lane.b32.xlu0 %v2020, 96
        %v2044 = vpop.permute.xlu0 %2043
        %v2053 = vsel %vm525, %v2030, 0.0
        %2054 = vadd.xlane.f32.xlu0 %v2053
        %v2055 = vpop.xlane.xlu0 %2054
        %v2056 = vsel %vm525, %v2032, 0.0
        %2057 = vadd.xlane.f32.xlu0 %v2056
        %v2058 = vpop.xlane.xlu0 %2057
        %v2059 = vsel %vm525, %v2034, 0.0
        %2060 = vadd.xlane.f32.xlu0 %v2059
        %v2061 = vpop.xlane.xlu0 %2060
        %v2062 = vsel %vm525, %v2036, 0.0
        %2063 = vadd.xlane.f32.xlu0 %v2062
        %v2064 = vpop.xlane.xlu0 %2063
        %v2065 = vsel %vm525, %v2038, 0.0
        %2066 = vadd.xlane.f32.xlu0 %v2065
        %v2067 = vpop.xlane.xlu0 %2066
        %v2068 = vsel %vm525, %v2040, 0.0
        %2069 = vadd.xlane.f32.xlu0 %v2068
        %v2070 = vpop.xlane.xlu0 %2069
        %v2071 = vsel %vm525, %v2042, 0.0
        %2072 = vadd.xlane.f32.xlu0 %v2071
        %v2073 = vpop.xlane.xlu0 %2072
        %v2074 = vsel %vm525, %v2044, 0.0
        %2075 = vadd.xlane.f32.xlu0 %v2074
        %v2076 = vpop.xlane.xlu0 %2075
        %v2077 = vmul.f32 %v2055, 0.03125
        %v2078 = vmul.f32 %v2058, 0.03125
        %v2079 = vmul.f32 %v2061, 0.03125
        %v2080 = vmul.f32 %v2064, 0.03125
        %v2081 = vmul.f32 %v2067, 0.03125
        %v2082 = vmul.f32 %v2070, 0.03125
        %v2083 = vmul.f32 %v2073, 0.03125
        %v2084 = vmul.f32 %v2076, 0.03125
        %v2085 = vsub.f32 %v2013, %v2077
        %v2086 = vsub.f32 %v2014, %v2078
        %v2087 = vsub.f32 %v2015, %v2079
        %v2088 = vsub.f32 %v2016, %v2080
        %v2089 = vsub.f32 %v2017, %v2081
        %v2090 = vsub.f32 %v2018, %v2082
        %v2091 = vsub.f32 %v2019, %v2083
        %v2092 = vsub.f32 %v2020, %v2084
        %v2093 = vmul.f32 %v2085, %v2085
        %v2094 = vmul.f32 %v2086, %v2086
        %v2095 = vmul.f32 %v2087, %v2087
        %v2096 = vmul.f32 %v2088, %v2088
        %v2097 = vmul.f32 %v2089, %v2089
        %v2098 = vmul.f32 %v2090, %v2090
        %v2099 = vmul.f32 %v2091, %v2091
        %v2100 = vmul.f32 %v2092, %v2092
        %2109 = vrot.lane.b32.xlu0 %v2093, 96
        %v2110 = vpop.permute.xlu0 %2109
        %2111 = vrot.lane.b32.xlu0 %v2094, 96
        %v2112 = vpop.permute.xlu0 %2111
        %2113 = vrot.lane.b32.xlu0 %v2095, 96
        %v2114 = vpop.permute.xlu0 %2113
        %2115 = vrot.lane.b32.xlu0 %v2096, 96
        %v2116 = vpop.permute.xlu0 %2115
        %2117 = vrot.lane.b32.xlu0 %v2097, 96
        %v2118 = vpop.permute.xlu0 %2117
        %2119 = vrot.lane.b32.xlu0 %v2098, 96
        %v2120 = vpop.permute.xlu0 %2119
        %2121 = vrot.lane.b32.xlu0 %v2099, 96
        %v2122 = vpop.permute.xlu0 %2121
        %2123 = vrot.lane.b32.xlu0 %v2100, 96
        %v2124 = vpop.permute.xlu0 %2123
        %v2133 = vsel %vm525, %v2110, 0.0
        %2134 = vadd.xlane.f32.xlu0 %v2133
        %v2135 = vpop.xlane.xlu0 %2134
        %v2136 = vsel %vm525, %v2112, 0.0
        %2137 = vadd.xlane.f32.xlu0 %v2136
        %v2138 = vpop.xlane.xlu0 %2137
        %v2139 = vsel %vm525, %v2114, 0.0
        %2140 = vadd.xlane.f32.xlu0 %v2139
        %v2141 = vpop.xlane.xlu0 %2140
        %v2142 = vsel %vm525, %v2116, 0.0
        %2143 = vadd.xlane.f32.xlu0 %v2142
        %v2144 = vpop.xlane.xlu0 %2143
        %v2145 = vsel %vm525, %v2118, 0.0
        %2146 = vadd.xlane.f32.xlu0 %v2145
        %v2147 = vpop.xlane.xlu0 %2146
        %v2148 = vsel %vm525, %v2120, 0.0
        %2149 = vadd.xlane.f32.xlu0 %v2148
        %v2150 = vpop.xlane.xlu0 %2149
        %v2151 = vsel %vm525, %v2122, 0.0
        %2152 = vadd.xlane.f32.xlu0 %v2151
        %v2153 = vpop.xlane.xlu0 %2152
        %v2154 = vsel %vm525, %v2124, 0.0
        %2155 = vadd.xlane.f32.xlu0 %v2154
        %v2156 = vpop.xlane.xlu0 %2155
        %v2157 = vmul.f32 %v2135, 0.03125
        %v2158 = vmul.f32 %v2138, 0.03125
        %v2159 = vmul.f32 %v2141, 0.03125
        %v2160 = vmul.f32 %v2144, 0.03125
        %v2161 = vmul.f32 %v2147, 0.03125
        %v2162 = vmul.f32 %v2150, 0.03125
        %v2163 = vmul.f32 %v2153, 0.03125
        %v2164 = vmul.f32 %v2156, 0.03125
        %v2165 = vadd.f32 %v2157, 1e-05
        %v2166 = vadd.f32 %v2158, 1e-05
        %v2167 = vadd.f32 %v2159, 1e-05
        %v2168 = vadd.f32 %v2160, 1e-05
        %v2169 = vadd.f32 %v2161, 1e-05
        %v2170 = vadd.f32 %v2162, 1e-05
        %v2171 = vadd.f32 %v2163, 1e-05
        %v2172 = vadd.f32 %v2164, 1e-05
        %v2173 = vrsqrt.pop %v2165
        %v2174 = vrsqrt.pop %v2166
        %v2175 = vrsqrt.pop %v2167
        %v2176 = vrsqrt.pop %v2168
        %v2177 = vrsqrt.pop %v2169
        %v2178 = vrsqrt.pop %v2170
        %v2179 = vrsqrt.pop %v2171
        %v2180 = vrsqrt.pop %v2172
        %v2181 = vmul.f32 %v2085, %v2173
        %v2182 = vmul.f32 %v2086, %v2174
        %v2183 = vmul.f32 %v2087, %v2175
        %v2184 = vmul.f32 %v2088, %v2176
        %v2185 = vmul.f32 %v2089, %v2177
        %v2186 = vmul.f32 %v2090, %v2178
        %v2187 = vmul.f32 %v2091, %v2179
        %v2188 = vmul.f32 %v2092, %v2180
        %2189 = vrot.lane.b32.xlu0 %v1949, 32
        %v2190 = vpop.permute.xlu0 %2189
        %v2192 = vmul.f32 %v2181, %v2190
        %v2193 = vmul.f32 %v2182, %v2190
        %v2194 = vmul.f32 %v2183, %v2190
        %v2195 = vmul.f32 %v2184, %v2190
        %v2196 = vmul.f32 %v2185, %v2190
        %v2197 = vmul.f32 %v2186, %v2190
        %v2198 = vmul.f32 %v2187, %v2190
        %v2199 = vmul.f32 %v2188, %v2190
        %2200 = vrot.lane.b32.xlu0 %v1963, 32
        %v2201 = vpop.permute.xlu0 %2200
        %v2203 = vadd.f32 %v2192, %v2201
        %v2204 = vadd.f32 %v2193, %v2201
        %v2205 = vadd.f32 %v2194, %v2201
        %v2206 = vadd.f32 %v2195, %v2201
        %v2207 = vadd.f32 %v2196, %v2201
        %v2208 = vadd.f32 %v2197, %v2201
        %v2209 = vadd.f32 %v2198, %v2201
        %v2210 = vadd.f32 %v2199, %v2201
        %v2211 = vmax.f32 %v1654, 0.0
        %v2212 = vmax.f32 %v1659, 0.0
        %v2213 = vmax.f32 %v1664, 0.0
        %v2214 = vmax.f32 %v1669, 0.0
        %v2215 = vmax.f32 %v1674, 0.0
        %v2216 = vmax.f32 %v1679, 0.0
        %v2217 = vmax.f32 %v1684, 0.0
        %v2218 = vmax.f32 %v1689, 0.0
        %v2219 = vadd.f32 %v278, %v2211
        %v2220 = vadd.f32 %v280, %v2212
        %v2221 = vadd.f32 %v282, %v2213
        %v2222 = vadd.f32 %v284, %v2214
        %v2223 = vadd.f32 %v286, %v2215
        %v2224 = vadd.f32 %v288, %v2216
        %v2225 = vadd.f32 %v290, %v2217
        %v2226 = vadd.f32 %v292, %v2218
        %v2227 = vsel %vm525, %v2219, 0.0
        %2228 = vadd.xlane.f32.xlu0 %v2227
        %v2229 = vpop.xlane.xlu0 %2228
        %v2230 = vsel %vm525, %v2220, 0.0
        %2231 = vadd.xlane.f32.xlu0 %v2230
        %v2232 = vpop.xlane.xlu0 %2231
        %v2233 = vsel %vm525, %v2221, 0.0
        %2234 = vadd.xlane.f32.xlu0 %v2233
        %v2235 = vpop.xlane.xlu0 %2234
        %v2236 = vsel %vm525, %v2222, 0.0
        %2237 = vadd.xlane.f32.xlu0 %v2236
        %v2238 = vpop.xlane.xlu0 %2237
        %v2239 = vsel %vm525, %v2223, 0.0
        %2240 = vadd.xlane.f32.xlu0 %v2239
        %v2241 = vpop.xlane.xlu0 %2240
        %v2242 = vsel %vm525, %v2224, 0.0
        %2243 = vadd.xlane.f32.xlu0 %v2242
        %v2244 = vpop.xlane.xlu0 %2243
        %v2245 = vsel %vm525, %v2225, 0.0
        %2246 = vadd.xlane.f32.xlu0 %v2245
        %v2247 = vpop.xlane.xlu0 %2246
        %v2248 = vsel %vm525, %v2226, 0.0
        %2249 = vadd.xlane.f32.xlu0 %v2248
        %v2250 = vpop.xlane.xlu0 %2249
        %v2251 = vmul.f32 %v2229, 0.03125
        %v2252 = vmul.f32 %v2232, 0.03125
        %v2253 = vmul.f32 %v2235, 0.03125
        %v2254 = vmul.f32 %v2238, 0.03125
        %v2255 = vmul.f32 %v2241, 0.03125
        %v2256 = vmul.f32 %v2244, 0.03125
        %v2257 = vmul.f32 %v2247, 0.03125
        %v2258 = vmul.f32 %v2250, 0.03125
        %v2259 = vsub.f32 %v2219, %v2251
        %v2260 = vsub.f32 %v2220, %v2252
        %v2261 = vsub.f32 %v2221, %v2253
        %v2262 = vsub.f32 %v2222, %v2254
        %v2263 = vsub.f32 %v2223, %v2255
        %v2264 = vsub.f32 %v2224, %v2256
        %v2265 = vsub.f32 %v2225, %v2257
        %v2266 = vsub.f32 %v2226, %v2258
        %v2267 = vmul.f32 %v2259, %v2259
        %v2268 = vmul.f32 %v2260, %v2260
        %v2269 = vmul.f32 %v2261, %v2261
        %v2270 = vmul.f32 %v2262, %v2262
        %v2271 = vmul.f32 %v2263, %v2263
        %v2272 = vmul.f32 %v2264, %v2264
        %v2273 = vmul.f32 %v2265, %v2265
        %v2274 = vmul.f32 %v2266, %v2266
        %v2275 = vsel %vm525, %v2267, 0.0
        %2276 = vadd.xlane.f32.xlu0 %v2275
        %v2277 = vpop.xlane.xlu0 %2276
        %v2278 = vsel %vm525, %v2268, 0.0
        %2279 = vadd.xlane.f32.xlu0 %v2278
        %v2280 = vpop.xlane.xlu0 %2279
        %v2281 = vsel %vm525, %v2269, 0.0
        %2282 = vadd.xlane.f32.xlu0 %v2281
        %v2283 = vpop.xlane.xlu0 %2282
        %v2284 = vsel %vm525, %v2270, 0.0
        %2285 = vadd.xlane.f32.xlu0 %v2284
        %v2286 = vpop.xlane.xlu0 %2285
        %v2287 = vsel %vm525, %v2271, 0.0
        %2288 = vadd.xlane.f32.xlu0 %v2287
        %v2289 = vpop.xlane.xlu0 %2288
        %v2290 = vsel %vm525, %v2272, 0.0
        %2291 = vadd.xlane.f32.xlu0 %v2290
        %v2292 = vpop.xlane.xlu0 %2291
        %v2293 = vsel %vm525, %v2273, 0.0
        %2294 = vadd.xlane.f32.xlu0 %v2293
        %v2295 = vpop.xlane.xlu0 %2294
        %v2296 = vsel %vm525, %v2274, 0.0
        %2297 = vadd.xlane.f32.xlu0 %v2296
        %v2298 = vpop.xlane.xlu0 %2297
        %v2299 = vmul.f32 %v2277, 0.03125
        %v2300 = vmul.f32 %v2280, 0.03125
        %v2301 = vmul.f32 %v2283, 0.03125
        %v2302 = vmul.f32 %v2286, 0.03125
        %v2303 = vmul.f32 %v2289, 0.03125
        %v2304 = vmul.f32 %v2292, 0.03125
        %v2305 = vmul.f32 %v2295, 0.03125
        %v2306 = vmul.f32 %v2298, 0.03125
        %v2307 = vadd.f32 %v2299, 1e-05
        %v2308 = vadd.f32 %v2300, 1e-05
        %v2309 = vadd.f32 %v2301, 1e-05
        %v2310 = vadd.f32 %v2302, 1e-05
        %v2311 = vadd.f32 %v2303, 1e-05
        %v2312 = vadd.f32 %v2304, 1e-05
        %v2313 = vadd.f32 %v2305, 1e-05
        %v2314 = vadd.f32 %v2306, 1e-05
        %v2315 = vrsqrt.pop %v2307
        %v2316 = vrsqrt.pop %v2308
        %v2317 = vrsqrt.pop %v2309
        %v2318 = vrsqrt.pop %v2310
        %v2319 = vrsqrt.pop %v2311
        %v2320 = vrsqrt.pop %v2312
        %v2321 = vrsqrt.pop %v2313
        %v2322 = vrsqrt.pop %v2314
        %v2323 = vmul.f32 %v2259, %v2315
        %v2324 = vmul.f32 %v2260, %v2316
        %v2325 = vmul.f32 %v2261, %v2317
        %v2326 = vmul.f32 %v2262, %v2318
        %v2327 = vmul.f32 %v2263, %v2319
        %v2328 = vmul.f32 %v2264, %v2320
        %v2329 = vmul.f32 %v2265, %v2321
        %v2330 = vmul.f32 %v2266, %v2322
        %v2331 = vmul.f32 %v2323, %v1949
        %v2332 = vmul.f32 %v2324, %v1949
        %v2333 = vmul.f32 %v2325, %v1949
        %v2334 = vmul.f32 %v2326, %v1949
        %v2335 = vmul.f32 %v2327, %v1949
        %v2336 = vmul.f32 %v2328, %v1949
        %v2337 = vmul.f32 %v2329, %v1949
        %v2338 = vmul.f32 %v2330, %v1949
        %v2339 = vadd.f32 %v2331, %v1963
        %v2340 = vadd.f32 %v2332, %v1963
        %v2341 = vadd.f32 %v2333, %v1963
        %v2342 = vadd.f32 %v2334, %v1963
        %v2343 = vadd.f32 %v2335, %v1963
        %v2344 = vadd.f32 %v2336, %v1963
        %v2345 = vadd.f32 %v2337, %v1963
        %v2346 = vadd.f32 %v2338, %v1963
        %v2347 = vmax.f32 %v1785, 0.0
        %v2348 = vmax.f32 %v1790, 0.0
        %v2349 = vmax.f32 %v1795, 0.0
        %v2350 = vmax.f32 %v1800, 0.0
        %v2351 = vmax.f32 %v1805, 0.0
        %v2352 = vmax.f32 %v1810, 0.0
        %v2353 = vmax.f32 %v1815, 0.0
        %v2354 = vmax.f32 %v1820, 0.0
        %2363 = vrot.lane.b32.xlu0 %v2347, 32
        %v2364 = vpop.permute.xlu0 %2363
        %2365 = vrot.lane.b32.xlu0 %v2348, 32
        %v2366 = vpop.permute.xlu0 %2365
        %2367 = vrot.lane.b32.xlu0 %v2349, 32
        %v2368 = vpop.permute.xlu0 %2367
        %2369 = vrot.lane.b32.xlu0 %v2350, 32
        %v2370 = vpop.permute.xlu0 %2369
        %2371 = vrot.lane.b32.xlu0 %v2351, 32
        %v2372 = vpop.permute.xlu0 %2371
        %2373 = vrot.lane.b32.xlu0 %v2352, 32
        %v2374 = vpop.permute.xlu0 %2373
        %2375 = vrot.lane.b32.xlu0 %v2353, 32
        %v2376 = vpop.permute.xlu0 %2375
        %2377 = vrot.lane.b32.xlu0 %v2354, 32
        %v2378 = vpop.permute.xlu0 %2377
        %v2387 = vadd.f32 %v278, %v2364
        %v2388 = vadd.f32 %v280, %v2366
        %v2389 = vadd.f32 %v282, %v2368
        %v2390 = vadd.f32 %v284, %v2370
        %v2391 = vadd.f32 %v286, %v2372
        %v2392 = vadd.f32 %v288, %v2374
        %v2393 = vadd.f32 %v290, %v2376
        %v2394 = vadd.f32 %v292, %v2378
        %2403 = vrot.lane.b32.xlu0 %v2387, 96
        %v2404 = vpop.permute.xlu0 %2403
        %2405 = vrot.lane.b32.xlu0 %v2388, 96
        %v2406 = vpop.permute.xlu0 %2405
        %2407 = vrot.lane.b32.xlu0 %v2389, 96
        %v2408 = vpop.permute.xlu0 %2407
        %2409 = vrot.lane.b32.xlu0 %v2390, 96
        %v2410 = vpop.permute.xlu0 %2409
        %2411 = vrot.lane.b32.xlu0 %v2391, 96
        %v2412 = vpop.permute.xlu0 %2411
        %2413 = vrot.lane.b32.xlu0 %v2392, 96
        %v2414 = vpop.permute.xlu0 %2413
        %2415 = vrot.lane.b32.xlu0 %v2393, 96
        %v2416 = vpop.permute.xlu0 %2415
        %2417 = vrot.lane.b32.xlu0 %v2394, 96
        %v2418 = vpop.permute.xlu0 %2417
        %v2427 = vsel %vm525, %v2404, 0.0
        %2428 = vadd.xlane.f32.xlu0 %v2427
        %v2429 = vpop.xlane.xlu0 %2428
        %v2430 = vsel %vm525, %v2406, 0.0
        %2431 = vadd.xlane.f32.xlu0 %v2430
        %v2432 = vpop.xlane.xlu0 %2431
        %v2433 = vsel %vm525, %v2408, 0.0
        %2434 = vadd.xlane.f32.xlu0 %v2433
        %v2435 = vpop.xlane.xlu0 %2434
        %v2436 = vsel %vm525, %v2410, 0.0
        %2437 = vadd.xlane.f32.xlu0 %v2436
        %v2438 = vpop.xlane.xlu0 %2437
        %v2439 = vsel %vm525, %v2412, 0.0
        %2440 = vadd.xlane.f32.xlu0 %v2439
        %v2441 = vpop.xlane.xlu0 %2440
        %v2442 = vsel %vm525, %v2414, 0.0
        %2443 = vadd.xlane.f32.xlu0 %v2442
        %v2444 = vpop.xlane.xlu0 %2443
        %v2445 = vsel %vm525, %v2416, 0.0
        %2446 = vadd.xlane.f32.xlu0 %v2445
        %v2447 = vpop.xlane.xlu0 %2446
        %v2448 = vsel %vm525, %v2418, 0.0
        %2449 = vadd.xlane.f32.xlu0 %v2448
        %v2450 = vpop.xlane.xlu0 %2449
        %v2451 = vmul.f32 %v2429, 0.03125
        %v2452 = vmul.f32 %v2432, 0.03125
        %v2453 = vmul.f32 %v2435, 0.03125
        %v2454 = vmul.f32 %v2438, 0.03125
        %v2455 = vmul.f32 %v2441, 0.03125
        %v2456 = vmul.f32 %v2444, 0.03125
        %v2457 = vmul.f32 %v2447, 0.03125
        %v2458 = vmul.f32 %v2450, 0.03125
        %v2459 = vsub.f32 %v2387, %v2451
        %v2460 = vsub.f32 %v2388, %v2452
        %v2461 = vsub.f32 %v2389, %v2453
        %v2462 = vsub.f32 %v2390, %v2454
        %v2463 = vsub.f32 %v2391, %v2455
        %v2464 = vsub.f32 %v2392, %v2456
        %v2465 = vsub.f32 %v2393, %v2457
        %v2466 = vsub.f32 %v2394, %v2458
        %v2467 = vmul.f32 %v2459, %v2459
        %v2468 = vmul.f32 %v2460, %v2460
        %v2469 = vmul.f32 %v2461, %v2461
        %v2470 = vmul.f32 %v2462, %v2462
        %v2471 = vmul.f32 %v2463, %v2463
        %v2472 = vmul.f32 %v2464, %v2464
        %v2473 = vmul.f32 %v2465, %v2465
        %v2474 = vmul.f32 %v2466, %v2466
        %2483 = vrot.lane.b32.xlu0 %v2467, 96
        %v2484 = vpop.permute.xlu0 %2483
        %2485 = vrot.lane.b32.xlu0 %v2468, 96
        %v2486 = vpop.permute.xlu0 %2485
        %2487 = vrot.lane.b32.xlu0 %v2469, 96
        %v2488 = vpop.permute.xlu0 %2487
        %2489 = vrot.lane.b32.xlu0 %v2470, 96
        %v2490 = vpop.permute.xlu0 %2489
        %2491 = vrot.lane.b32.xlu0 %v2471, 96
        %v2492 = vpop.permute.xlu0 %2491
        %2493 = vrot.lane.b32.xlu0 %v2472, 96
        %v2494 = vpop.permute.xlu0 %2493
        %2495 = vrot.lane.b32.xlu0 %v2473, 96
        %v2496 = vpop.permute.xlu0 %2495
        %2497 = vrot.lane.b32.xlu0 %v2474, 96
        %v2498 = vpop.permute.xlu0 %2497
        %v2507 = vsel %vm525, %v2484, 0.0
        %2508 = vadd.xlane.f32.xlu0 %v2507
        %v2509 = vpop.xlane.xlu0 %2508
        %v2510 = vsel %vm525, %v2486, 0.0
        %2511 = vadd.xlane.f32.xlu0 %v2510
        %v2512 = vpop.xlane.xlu0 %2511
        %v2513 = vsel %vm525, %v2488, 0.0
        %2514 = vadd.xlane.f32.xlu0 %v2513
        %v2515 = vpop.xlane.xlu0 %2514
        %v2516 = vsel %vm525, %v2490, 0.0
        %2517 = vadd.xlane.f32.xlu0 %v2516
        %v2518 = vpop.xlane.xlu0 %2517
        %v2519 = vsel %vm525, %v2492, 0.0
        %2520 = vadd.xlane.f32.xlu0 %v2519
        %v2521 = vpop.xlane.xlu0 %2520
        %v2522 = vsel %vm525, %v2494, 0.0
        %2523 = vadd.xlane.f32.xlu0 %v2522
        %v2524 = vpop.xlane.xlu0 %2523
        %v2525 = vsel %vm525, %v2496, 0.0
        %2526 = vadd.xlane.f32.xlu0 %v2525
        %v2527 = vpop.xlane.xlu0 %2526
        %v2528 = vsel %vm525, %v2498, 0.0
        %2529 = vadd.xlane.f32.xlu0 %v2528
        %v2530 = vpop.xlane.xlu0 %2529
        %v2531 = vmul.f32 %v2509, 0.03125
        %v2532 = vmul.f32 %v2512, 0.03125
        %v2533 = vmul.f32 %v2515, 0.03125
        %v2534 = vmul.f32 %v2518, 0.03125
        %v2535 = vmul.f32 %v2521, 0.03125
        %v2536 = vmul.f32 %v2524, 0.03125
        %v2537 = vmul.f32 %v2527, 0.03125
        %v2538 = vmul.f32 %v2530, 0.03125
        %v2539 = vadd.f32 %v2531, 1e-05
        %v2540 = vadd.f32 %v2532, 1e-05
        %v2541 = vadd.f32 %v2533, 1e-05
        %v2542 = vadd.f32 %v2534, 1e-05
        %v2543 = vadd.f32 %v2535, 1e-05
        %v2544 = vadd.f32 %v2536, 1e-05
        %v2545 = vadd.f32 %v2537, 1e-05
        %v2546 = vadd.f32 %v2538, 1e-05
        %v2547 = vrsqrt.pop %v2539
        %v2548 = vrsqrt.pop %v2540
        %v2549 = vrsqrt.pop %v2541
        %v2550 = vrsqrt.pop %v2542
        %v2551 = vrsqrt.pop %v2543
        %v2552 = vrsqrt.pop %v2544
        %v2553 = vrsqrt.pop %v2545
        %v2554 = vrsqrt.pop %v2546
        %v2555 = vmul.f32 %v2459, %v2547
        %v2556 = vmul.f32 %v2460, %v2548
        %v2557 = vmul.f32 %v2461, %v2549
        %v2558 = vmul.f32 %v2462, %v2550
        %v2559 = vmul.f32 %v2463, %v2551
        %v2560 = vmul.f32 %v2464, %v2552
        %v2561 = vmul.f32 %v2465, %v2553
        %v2562 = vmul.f32 %v2466, %v2554
        %v2563 = vmul.f32 %v2555, %v2190
        %v2564 = vmul.f32 %v2556, %v2190
        %v2565 = vmul.f32 %v2557, %v2190
        %v2566 = vmul.f32 %v2558, %v2190
        %v2567 = vmul.f32 %v2559, %v2190
        %v2568 = vmul.f32 %v2560, %v2190
        %v2569 = vmul.f32 %v2561, %v2190
        %v2570 = vmul.f32 %v2562, %v2190
        %v2571 = vadd.f32 %v2563, %v2201
        %v2572 = vadd.f32 %v2564, %v2201
        %v2573 = vadd.f32 %v2565, %v2201
        %v2574 = vadd.f32 %v2566, %v2201
        %v2575 = vadd.f32 %v2567, %v2201
        %v2576 = vadd.f32 %v2568, %v2201
        %v2577 = vadd.f32 %v2569, %v2201
        %v2578 = vadd.f32 %v2570, %v2201
        %v2579 = vsel %vm525, %v1965, %v2203
        %v2580 = vsel %vm525, %v1966, %v2204
        %v2581 = vsel %vm525, %v1967, %v2205
        %v2582 = vsel %vm525, %v1968, %v2206
        %v2583 = vsel %vm525, %v1969, %v2207
        %v2584 = vsel %vm525, %v1970, %v2208
        %v2585 = vsel %vm525, %v1971, %v2209
        %v2586 = vsel %vm525, %v1972, %v2210
        %v2587 = vsel %vm525, %v2339, %v2571
        %v2588 = vsel %vm525, %v2340, %v2572
        %v2589 = vsel %vm525, %v2341, %v2573
        %v2590 = vsel %vm525, %v2342, %v2574
        %v2591 = vsel %vm525, %v2343, %v2575
        %v2592 = vsel %vm525, %v2344, %v2576
        %v2593 = vsel %vm525, %v2345, %v2577
        %v2594 = vsel %vm525, %v2346, %v2578
        %2595 = vst.msk [vmem:[%s271] sm:$0xff] %vm534, %v2579
        %2596 = vst.msk [vmem:[%s271 + $0x10] sm:$0xff] %vm534, %v2580
        %2597 = vst.msk [vmem:[%s271 + $0x20] sm:$0xff] %vm534, %v2581
        %2598 = vst.msk [vmem:[%s271 + $0x30] sm:$0xff] %vm534, %v2582
        %2599 = vst.msk [vmem:[%s271 + $0x40] sm:$0xff] %vm534, %v2583
        %2600 = vst.msk [vmem:[%s271 + $0x50] sm:$0xff] %vm534, %v2584
        %2601 = vst.msk [vmem:[%s271 + $0x60] sm:$0xff] %vm534, %v2585
        %2602 = vst.msk [vmem:[%s271 + $0x70] sm:$0xff] %vm534, %v2586
        %s2603 = scalar_lea.vmem %s271, 8 [#allocation2]
        %2604 = vst.msk [vmem:[%s2603] sm:$0xff] %vm534, %v2587
        %2605 = vst.msk [vmem:[%s2603 + $0x10] sm:$0xff] %vm534, %v2588
        %2606 = vst.msk [vmem:[%s2603 + $0x20] sm:$0xff] %vm534, %v2589
        %2607 = vst.msk [vmem:[%s2603 + $0x30] sm:$0xff] %vm534, %v2590
        %2608 = vst.msk [vmem:[%s2603 + $0x40] sm:$0xff] %vm534, %v2591
        %2609 = vst.msk [vmem:[%s2603 + $0x50] sm:$0xff] %vm534, %v2592
        %2610 = vst.msk [vmem:[%s2603 + $0x60] sm:$0xff] %vm534, %v2593
        %2611 = vst.msk [vmem:[%s2603 + $0x70] sm:$0xff] %vm534, %v2594
        %s2612 = sand.u32 %s181, 1
        %s2613 = scalar_lea.sflag [#allocation3], %s2612
        %s2614 = sand.u32 %s181, 1
        %s2615 = smul.addr %s2614, 128
        %s2616 = scalar_lea.vmem [#allocation2], %s2615
        // Predicated region
        $region49: #{tpu_custom_call.1} parent=47 // pred_check
          %p2617 = pneg %p191
        $region50: #{tpu_custom_call.1} parent=47 // pred_check_branch
          %2619 = sbr.rel (%p2617) target = $region52
        $region51: #{tpu_custom_call.1} parent=47 // pred_region
          %s2621 = ssub.s32 2048, 2048
          %2622 = vsyncadd %s2613, %s2621
          %s2623 = smul.addr %s21, 16
          %s2624 = smul.addr %s2623, 128
          %s2625 = scalar_lea.hbm %s7, %s2624
          %s2626 = sshll.u32 %s2616, 4
          %s2627 = int_to_ptr.vmem [resolvable:$true] %s2626
          %2632 = dma.vmem_to_hbm [thread:$0]  %s2627, 2048, %s2625, %s2613, 128, 128, 8
        $region52: #{tpu_custom_call.1} parent=47 // pred_fallthru
          _
      $region48: #{tpu_custom_call.1} parent=5 // pred_fallthru
        _
      %p2633 = scmp.le.s32.totalorder 2, %s16
      // Predicated region
      $region53: #{tpu_custom_call.1} parent=5 // pred_check
        %p2634 = pneg %p2633
      $region54: #{tpu_custom_call.1} parent=5 // pred_check_branch
        %2636 = sbr.rel (%p2634) target = $region56
      $region55: #{tpu_custom_call.1} parent=5 // pred_region
        %s2637 = ssub.s32 %s16, 2
        // Predicated region
        $region57: #{tpu_custom_call.1} parent=55 // pred_check
          %p2638 = pneg %p197
        $region58: #{tpu_custom_call.1} parent=55 // pred_check_branch
          %2640 = sbr.rel (%p2638) target = $region60
        $region59: #{tpu_custom_call.1} parent=55 // pred_region
          %s2641 = sand.u32 %s182, 1
          %s2642 = scalar_lea.sflag [#allocation3], %s2641
          %s2643 = sand.u32 %s182, 1
          %s2644 = smul.addr %s2643, 128
          %s2645 = scalar_lea.vmem [#allocation2], %s2644
          %2646 = dma.done %s2642, 2048
        $region60: #{tpu_custom_call.1} parent=55 // pred_fallthru
          _
      $region56: #{tpu_custom_call.1} parent=5 // pred_fallthru
        _
    $region6: #{tpu_custom_call.1} parent=1 // loop_footer
      %s20 = sadd.s32 1, %s16
    $region7: #{tpu_custom_call.1} parent=1 // loop_footer_branch
      %15 = sbr.rel target = $region3
    $region8: #{tpu_custom_call.1} parent=1 // loop_exit
      _
    %2647 = vsyncpa [#allocation3], 1
    %s2648 = scalar_lea.sflag [#allocation3], 1
    %2649 = vsyncpa %s2648, 1

</llo_original>
